<compile_context>
chip_gen: v7x
topology: tpu7x:2x2x1
jax: 0.10.0
libtpu: 0.0.40
codegen_flags: <defaults>
</compile_context>

<pallas_src>
import numpy as np
import jax
import jax.numpy as jnp
from jax.experimental import pallas as pl
from jax.experimental.pallas import tpu as pltpu


def tikhonov_kernel(x_ref, x0_ref, var_ref, Ht_ref, w2_ref, Ac_ref, out_ref):
    """Fused: forward_H, Wiener denoise, folded completion + inverse."""
    x0 = x0_ref[...]                                                    # (TB, N) bf16

    # x - GF x_0   (bf16 operands, f32 accumulation on the MXU; Ht is +/-1, exact)
    hx0 = jnp.dot(x0.astype(jnp.bfloat16), Ht_ref[...],
                  preferred_element_type=jnp.float32)                   # (TB, M)
    xd = x_ref[...] - hx0                                               # (TB, M) f32

    # Denoise_layer.tikho: w^2 / (w^2 + var). Approximate reciprocal -> EUP slot.
    w2 = w2_ref[...]                                                    # (1, M)
    gain = w2 * pl.reciprocal(w2 + var_ref[...], approx=True)           # (TB, M)
    y1 = gain * xd                                                      # (TB, M)

    # Folded completion + inverse: y1 @ (A1 + W.T @ A2)
    rec = jnp.dot(y1.astype(jnp.bfloat16), Ac_ref[...],
                  preferred_element_type=jnp.float32)                   # (TB, N)

    out_ref[...] = (x0.astype(jnp.float32) + rec).astype(out_ref.dtype)


def _vmem_limit_bytes(default=48 * 1024 * 1024):
    """~80% of physical VMEM: ~51 MiB on v7x (64 MiB), ~102 MiB on v5e/v6e (128 MiB)."""
    try:
        cap = int(getattr(pltpu.get_tpu_info(), "vmem_capacity_bytes", 0) or 0)
    except Exception:
        cap = 0
    if cap <= 0:
        return default
    return min(int(cap * 0.8), cap - 8 * 1024 * 1024)


def tikhonov_forward(x, x_0, var, Ht_bf, w2, A_comb_bf, *, tb=256,
                     out_dtype=jnp.float32):
    """x:(B,M) f32, x_0:(B,N) bf16 (or f32), var:(B,M) f32,
    Ht_bf:(N,M) bf16, w2:(1,M) f32, A_comb_bf:(M,N) bf16  ->  (B,N) out_dtype."""
    B, M = x.shape
    N = x_0.shape[1]

    # Keep >= 2 grid steps when possible (both v7x TCs busy + DMA/compute overlap).
    if B > 128 and pl.cdiv(B, tb) < 2:
        tb = max(128, 128 * pl.cdiv(pl.cdiv(B, 2), 128))
    grid = (pl.cdiv(B, tb),)   # no jnp.pad: Pallas masks the partial last block

    full = lambda i: (0, 0)
    batch = lambda i: (i, 0)
    once = pl.Buffered(buffer_count=1)   # constant weights: DMA once, single buffer

    return pl.pallas_call(
        tikhonov_kernel,
        out_shape=jax.ShapeDtypeStruct((B, N), out_dtype),
        grid_spec=pltpu.PrefetchScalarGridSpec(
            num_scalar_prefetch=0,
            grid=grid,
            in_specs=[
                pl.BlockSpec((tb, M), batch),                       # x      (f32)
                pl.BlockSpec((tb, N), batch),                       # x_0    (bf16)
                pl.BlockSpec((tb, M), batch),                       # var    (f32)
                pl.BlockSpec((N, M), full, pipeline_mode=once),     # Ht     (bf16, +/-1)
                pl.BlockSpec((1, M), full, pipeline_mode=once),     # w2     (f32)
                pl.BlockSpec((M, N), full, pipeline_mode=once),     # A_comb (bf16)
            ],
            out_specs=pl.BlockSpec((tb, N), batch),
        ),
        compiler_params=pltpu.CompilerParams(
            dimension_semantics=("parallel",),
            vmem_limit_bytes=_vmem_limit_bytes(),
        ),
    )(x, x_0, var, Ht_bf, w2, A_comb_bf)


def sylvester_hadamard(n):
    """n must be a power of 2. Returns (n, n) +/-1 Hadamard matrix."""
    H = np.array([[1.0]], dtype=np.float64)
    while H.shape[0] < n:
        H = np.block([[H, H], [H, -H]])
    return H


def _bf16_round_np(a):
    """Round a numpy array to bf16 and return it as float64 (mimics kernel casts)."""
    return np.asarray(
        jnp.asarray(np.asarray(a, dtype=np.float32), dtype=jnp.bfloat16
                    ).astype(jnp.float32), dtype=np.float64)


def reference_bf16(x, x0_bf64, var, Ht_f, w2, Ac_f):
    """Reference mimicking the kernel's bf16-operand / f32-accumulate numerics.

    x0_bf64 must already hold the bf16-rounded x_0 values (as float64)."""
    hx0 = x0_bf64 @ Ht_f
    xd = np.asarray(x, dtype=np.float64) - hx0
    gain = w2 / (w2 + np.asarray(var, dtype=np.float64))
    y1 = gain * xd
    y1_bf = _bf16_round_np(y1)
    rec = y1_bf @ Ac_f
    return x0_bf64 + rec


def reference_exact(x, x_0, var, Hmeas, w2, W, Ainv):
    """Exact float64 reference of the original module semantics."""
    x = np.asarray(x, dtype=np.float64)
    x_0 = np.asarray(x_0, dtype=np.float64)
    var = np.asarray(var, dtype=np.float64)
    xd = x - x_0 @ Hmeas.T
    y1 = (w2 / (w2 + var)) * xd
    y2 = y1 @ W.T
    y = np.concatenate([y1, y2], axis=-1)
    return x_0 + y @ Ainv


if __name__ == "__main__":
    # Small TPU-friendly sizes: image h x h with N = h^2, M measurements.
    h = 16
    N = h * h          # 256
    M = 128
    B = 1000           # NOT a multiple of tb=256 -> exercises the un-padded partial block

    # ---- Deterministic "covariance prior" sigma (as in __init__) ----
    rng = np.random.default_rng(0)
    R = rng.standard_normal((N, N))
    sigma = (R @ R.T) / N + 0.5 * np.eye(N)              # SPD, deterministic

    var_prior = np.diag(sigma)[:M]                       # diag(Sigma_1) = w^2 (> 0)
    Sigma1 = sigma[:M, :M]
    Sigma21 = sigma[M:, :M]
    W = Sigma21 @ np.linalg.inv(Sigma1)                  # (N-M, M) comp weight

    # ---- Measurement operator stand-in (HadamSplit) ----
    Hfull = sylvester_hadamard(N)                        # symmetric, H H^T = N I
    Hmeas = Hfull[:M, :]                                 # forward_H matrix (M, N)
    Ainv = Hfull.T / N                                   # inverse(y) = y @ Ainv
    A1, A2 = Ainv[:M, :], Ainv[M:, :]
    A_comb = A1 + W.T @ A2                               # folded (M, N) matrix

    # Device weights: bf16 matmul operands, f32 elementwise parameters.
    Ht_bf = jnp.asarray(Hmeas.T, dtype=jnp.bfloat16)         # (N, M), +/-1 exact
    A_comb_bf = jnp.asarray(A_comb, dtype=jnp.bfloat16)      # (M, N) (keep f32 if
                                                             # tighter accuracy needed)
    w2 = jnp.asarray(var_prior[None, :], dtype=jnp.float32)  # (1, M)
    assert np.all(var_prior > 0.0)   # approx reciprocal never sees zero/denormal

    # ---- Inputs ----
    key = jax.random.PRNGKey(0)
    k1, k2, k3 = jax.random.split(key, 3)
    x = jax.random.normal(k1, (B, M), dtype=jnp.float32)       # measurements y
    x_0f = jax.random.normal(k2, (B, N), dtype=jnp.float32)    # prior images (f32)
    var = jax.random.uniform(k3, (B, M), dtype=jnp.float32)    # meas. noise var
    x_0 = x_0f.astype(jnp.bfloat16)    # prior image streamed in bf16 (caller convention)

    out = tikhonov_forward(x, x_0, var, Ht_bf, w2, A_comb_bf, tb=256)
    out = jax.block_until_ready(out)
    out_np = np.asarray(out)
    assert out_np.shape == (B, N)

    # Check against a reference with the same bf16 operand rounding.
    Ht_f = np.asarray(Ht_bf.astype(jnp.float32), dtype=np.float64)
    Ac_f = np.asarray(A_comb_bf.astype(jnp.float32), dtype=np.float64)
    w2_f = np.asarray(var_prior[:M], dtype=np.float64)[None, :]
    x0_bf64 = np.asarray(x_0.astype(jnp.float32), dtype=np.float64)
    ref_bf = reference_bf16(np.asarray(x), x0_bf64, np.asarray(var), Ht_f, w2_f, Ac_f)
    np.testing.assert_allclose(out_np, ref_bf, rtol=1e-2, atol=1e-2)

    # Loose sanity check against the exact float64 module semantics.
    ref_exact = reference_exact(np.asarray(x), np.asarray(x_0f), np.asarray(var),
                                Hmeas, w2_f, W, Ainv)
    np.testing.assert_allclose(out_np, ref_exact, rtol=5e-2, atol=5e-2)

    print("KERNEL_OK")
</pallas_src>

<mosaic_0001>
module attributes {stable_mosaic.version = 11 : i64} {
  func.func @tikhonov_kernel(%arg0: i32, %arg1: memref<256x128xf32, #tpu.memory_space<vmem>>, %arg2: memref<256x256xbf16, #tpu.memory_space<vmem>>, %arg3: memref<256x128xf32, #tpu.memory_space<vmem>>, %arg4: memref<256x128xbf16, #tpu.memory_space<vmem>>, %arg5: memref<1x128xf32, #tpu.memory_space<vmem>>, %arg6: memref<128x256xbf16, #tpu.memory_space<vmem>>, %arg7: memref<256x256xf32, #tpu.memory_space<vmem>>) attributes {dimension_semantics = [#tpu.dimension_semantics<parallel>], iteration_bounds = array<i64: 4>, scalar_prefetch = 0 : i64, scratch_operands = 0 : i64, tpu.core_type = #tpu.core_type<tc>, window_params = [{transform_indices = @transform_0, window_bounds = array<i64: 256, 128>}, {transform_indices = @transform_1, window_bounds = array<i64: 256, 256>}, {transform_indices = @transform_2, window_bounds = array<i64: 256, 128>}, {pipeline_mode = #tpu.pipeline_mode<synchronous>, transform_indices = @transform_3, window_bounds = array<i64: 256, 128>}, {pipeline_mode = #tpu.pipeline_mode<synchronous>, transform_indices = @transform_4, window_bounds = array<i64: 1, 128>}, {pipeline_mode = #tpu.pipeline_mode<synchronous>, transform_indices = @transform_5, window_bounds = array<i64: 128, 256>}, {transform_indices = @transform_6, window_bounds = array<i64: 256, 256>}]} {
    %c0 = arith.constant 0 : index
    %c0_0 = arith.constant 0 : index
    %0 = vector.load %arg2[%c0, %c0_0] : memref<256x256xbf16, #tpu.memory_space<vmem>>, vector<256x256xbf16>
    %c0_1 = arith.constant 0 : index
    %c0_2 = arith.constant 0 : index
    %1 = vector.load %arg4[%c0_1, %c0_2] : memref<256x128xbf16, #tpu.memory_space<vmem>>, vector<256x128xbf16>
    %cst = arith.constant dense<0.000000e+00> : vector<256x128xf32>
    %2 = tpu.matmul %0, %1, %cst {dimension_numbers = #tpu.dot_dimension_numbers<[1], [0], [0], [1], [0, 0, 1, 1], [], []>} : vector<256x256xbf16>, vector<256x128xbf16>, vector<256x128xf32> -> vector<256x128xf32>
    %c0_3 = arith.constant 0 : index
    %c0_4 = arith.constant 0 : index
    %3 = vector.load %arg1[%c0_3, %c0_4] : memref<256x128xf32, #tpu.memory_space<vmem>>, vector<256x128xf32>
    %4 = arith.subf %3, %2 : vector<256x128xf32>
    %c0_5 = arith.constant 0 : index
    %c0_6 = arith.constant 0 : index
    %5 = vector.load %arg5[%c0_5, %c0_6] : memref<1x128xf32, #tpu.memory_space<vmem>>, vector<1x128xf32>
    %c0_7 = arith.constant 0 : index
    %c0_8 = arith.constant 0 : index
    %6 = vector.load %arg3[%c0_7, %c0_8] : memref<256x128xf32, #tpu.memory_space<vmem>>, vector<256x128xf32>
    %7 = vector.broadcast %5 : vector<1x128xf32> to vector<256x128xf32>
    %8 = arith.addf %7, %6 : vector<256x128xf32>
    %9 = tpu.reciprocal %8 {approx = true} : vector<256x128xf32> -> vector<256x128xf32>
    %10 = vector.broadcast %5 : vector<1x128xf32> to vector<256x128xf32>
    %11 = arith.mulf %10, %9 : vector<256x128xf32>
    %12 = arith.mulf %11, %4 : vector<256x128xf32>
    %13 = arith.truncf %12 : vector<256x128xf32> to vector<256x128xbf16>
    %c0_9 = arith.constant 0 : index
    %c0_10 = arith.constant 0 : index
    %14 = vector.load %arg6[%c0_9, %c0_10] : memref<128x256xbf16, #tpu.memory_space<vmem>>, vector<128x256xbf16>
    %cst_11 = arith.constant dense<0.000000e+00> : vector<256x256xf32>
    %15 = tpu.matmul %13, %14, %cst_11 {dimension_numbers = #tpu.dot_dimension_numbers<[1], [0], [0], [1], [0, 0, 1, 1], [], []>} : vector<256x128xbf16>, vector<128x256xbf16>, vector<256x256xf32> -> vector<256x256xf32>
    %16 = arith.extf %0 : vector<256x256xbf16> to vector<256x256xf32>
    %17 = arith.addf %16, %15 : vector<256x256xf32>
    %c0_12 = arith.constant 0 : index
    %c0_13 = arith.constant 0 : index
    %18 = vector.load %arg7[%c0_12, %c0_13] : memref<256x256xf32, #tpu.memory_space<vmem>>, vector<256x256xf32>
    tpu.vector_store %arg7[%c0_12, %c0_13], %17 {strides = array<i32>} : memref<256x256xf32, #tpu.memory_space<vmem>>, vector<256x256xf32>,
    return
  }
  func.func @transform_0(%arg0: i32) -> (i32, i32) {
    %c0_i32 = arith.constant 0 : i32
    %c0_i32_0 = arith.constant 0 : i32
    return %arg0, %c0_i32 : i32, i32
  }
  func.func @transform_1(%arg0: i32) -> (i32, i32) {
    %c0_i32 = arith.constant 0 : i32
    %c0_i32_0 = arith.constant 0 : i32
    return %arg0, %c0_i32 : i32, i32
  }
  func.func @transform_2(%arg0: i32) -> (i32, i32) {
    %c0_i32 = arith.constant 0 : i32
    %c0_i32_0 = arith.constant 0 : i32
    return %arg0, %c0_i32 : i32, i32
  }
  func.func @transform_3(%arg0: i32) -> (i32, i32) {
    %c0_i32 = arith.constant 0 : i32
    %c0_i32_0 = arith.constant 0 : i32
    %c0_i32_1 = arith.constant 0 : i32
    return %c0_i32, %c0_i32_0 : i32, i32
  }
  func.func @transform_4(%arg0: i32) -> (i32, i32) {
    %c0_i32 = arith.constant 0 : i32
    %c0_i32_0 = arith.constant 0 : i32
    %c0_i32_1 = arith.constant 0 : i32
    return %c0_i32, %c0_i32_0 : i32, i32
  }
  func.func @transform_5(%arg0: i32) -> (i32, i32) {
    %c0_i32 = arith.constant 0 : i32
    %c0_i32_0 = arith.constant 0 : i32
    %c0_i32_1 = arith.constant 0 : i32
    return %c0_i32, %c0_i32_0 : i32, i32
  }
  func.func @transform_6(%arg0: i32) -> (i32, i32) {
    %c0_i32 = arith.constant 0 : i32
    %c0_i32_0 = arith.constant 0 : i32
    return %arg0, %c0_i32 : i32, i32
  }
}

</mosaic_0001>

<llo_original>
// kernel: tpu_custom_call.1
$region0: #{tpu_custom_call.1}
  #allocation0 [shape = 'u32[]', space=smem, size = 0x4, offset = 0x4, fixed_abs, tag = 'smem constant byte address 0x4 - core index']
  #allocation1 [shape = 'u32[144,128]{1,0:T(1,128)}', space=vmem, size = 0x12000, scoped, tag = 'internal scratch']
  %s0 = inlined_call_operand.hbm [shape: f32[1000,128], index: 0, kind: input, shape index: {}]
  %s1 = inlined_call_operand.hbm [shape: bf16[1000,256], index: 1, kind: input, shape index: {}]
  %s2 = inlined_call_operand.hbm [shape: f32[1000,128], index: 2, kind: input, shape index: {}]
  %s3 = inlined_call_operand.hbm [shape: bf16[256,128], index: 3, kind: input, shape index: {}]
  %s4 = inlined_call_operand.vmem [shape: f32[1,128], index: 4, kind: input, shape index: {}]
  %s5 = inlined_call_operand.hbm [shape: bf16[128,256], index: 5, kind: input, shape index: {}]
  %s6 = inlined_call_operand.hbm [shape: f32[1000,256], index: 6, kind: output, shape index: {}]
  %s7 = sld [smem:[#allocation0]]
  $region77: #{tpu_custom_call.1} parent=0
    _
  %s9 = ssub.s32 1, %s7
  %s10 = scalar_select 0, %s9, %s7
  $region1: #{tpu_custom_call.1} parent=0
    #allocation2 [shape = 'u8[262144]{0}', space=vmem, size = 0x40000, scoped, tag = 'input window, operand 0']
    #allocation3 [shape = 's32[2]{0}', space=sflag, size = 0x8, scoped, tag = 'scoped memory for tpu_custom_call.1']
    #allocation4 [shape = 's32[2]{0}', space=sflag, size = 0x8, scoped, tag = 'scoped memory for tpu_custom_call.1']
    #allocation5 [shape = 'u8[262144]{0}', space=vmem, size = 0x40000, scoped, tag = 'input window, operand 1']
    #allocation6 [shape = 's32[2]{0}', space=sflag, size = 0x8, scoped, tag = 'scoped memory for tpu_custom_call.1']
    #allocation7 [shape = 'u8[262144]{0}', space=vmem, size = 0x40000, scoped, tag = 'input window, operand 2']
    #allocation8 [shape = 'u8[65536]{0}', space=vmem, size = 0x10000, scoped, tag = 'input window, operand 3, single buffered']
    #allocation9 [shape = 's32[1]{0}', space=sflag, size = 0x4, scoped, tag = 'scoped memory for tpu_custom_call.1']
    #allocation10 [shape = 'u8[65536]{0}', space=vmem, size = 0x10000, scoped, tag = 'input window, operand 5, single buffered']
    #allocation11 [shape = 'u8[524288]{0}', space=vmem, size = 0x80000, scoped, tag = 'output window, operand 0']
    %11 = vsyncpa [#allocation3], 0
    %s12 = scalar_lea.sflag [#allocation3], 1
    %13 = vsyncpa %s12, 0
    %14 = vsyncpa [#allocation6], 0
    %s15 = scalar_lea.sflag [#allocation6], 1
    %16 = vsyncpa %s15, 0
    %17 = vsyncpa [#allocation9], 0
    %18 = vsyncpa [#allocation4], 0
    %s19 = scalar_lea.sflag [#allocation4], 1
    %20 = vsyncpa %s19, 0
    loop: start=0, step=1, limit=6
    $region2: #{tpu_custom_call.1} parent=1 // loop_pre_header
      _
    $region3: #{tpu_custom_call.1} parent=1 // loop_header
      %s22 = sphi 0, %s26
      %p23 = scmp.ge.s32.totalorder %s22, 6
      %s32 = sphi 0, %s34
      %s35 = sphi 0, %s32
      %s36 = sphi 0, %s35
      %s52 = sphi 0, %s36
      %s58 = sphi 0, %s60
      %s61 = sphi 0, %s58
      %s62 = sphi 0, %s61
      %s78 = sphi 0, %s62
      %s84 = sphi 0, %s86
      %s87 = sphi 0, %s84
      %s88 = sphi 0, %s87
      %s104 = sphi 0, %s88
      %s108 = sphi 0, %s108
      %s110 = sphi 0, %s108
      %s111 = sphi 0, %s110
      %s125 = sphi 0, %s111
      %s129 = sphi 0, %s129
      %s131 = sphi 0, %s129
      %s132 = sphi 0, %s131
      %s146 = sphi 0, %s132
      %s150 = sphi 0, %s150
      %s152 = sphi 0, %s150
      %s153 = sphi 0, %s152
      %s167 = sphi 0, %s153
      %s173 = sphi 0, %s175
      %s176 = sphi 0, %s173
      %s177 = sphi 0, %s176
      %s193 = sphi 0, %s177
    $region4: #{tpu_custom_call.1} parent=1 // loop_header_branch
      %25 = sbr.rel (%p23) target = $region8
    $region5: #{tpu_custom_call.1} parent=1 // loop_body
      %s27 = ssub.s32 %s22, 1
      %s28 = ssub.s32 %s22, 2
      %s29 = sadd.s32 %s22, 1
      %s30 = ssub.s32 %s22, %s29
      %p31 = scmp.eq.s32.totalorder %s30, 0
      %s33 = sadd.s32 %s32, 1
      %s34 = scalar_select %p31, %s32, %s33
      %p37 = pneg %p31
      %p38 = scmp.eq.s32.totalorder %s22, 3
      %p39 = por %p37, %p38
      %p40 = scmp.ne.s32.totalorder %s32, %s35
      %p41 = scmp.eq.s32.totalorder %s22, 0
      %p42 = por %p40, %p41
      %p43 = scmp.ne.s32.totalorder %s32, %s35
      %p44 = scmp.eq.s32.totalorder %s27, 3
      %p45 = por %p43, %p44
      %p46 = scmp.ne.s32.totalorder %s35, %s36
      %p47 = scmp.eq.s32.totalorder %s27, 0
      %p48 = por %p46, %p47
      %p49 = scmp.ne.s32.totalorder %s35, %s36
      %p50 = scmp.eq.s32.totalorder %s28, 3
      %p51 = por %p49, %p50
      %p53 = scmp.ne.s32.totalorder %s36, %s52
      %p54 = scmp.eq.s32.totalorder %s28, 0
      %p55 = por %p53, %p54
      %s56 = ssub.s32 %s22, %s29
      %p57 = scmp.eq.s32.totalorder %s56, 0
      %s59 = sadd.s32 %s58, 1
      %s60 = scalar_select %p57, %s58, %s59
      %p63 = pneg %p57
      %p64 = scmp.eq.s32.totalorder %s22, 3
      %p65 = por %p63, %p64
      %p66 = scmp.ne.s32.totalorder %s58, %s61
      %p67 = scmp.eq.s32.totalorder %s22, 0
      %p68 = por %p66, %p67
      %p69 = scmp.ne.s32.totalorder %s58, %s61
      %p70 = scmp.eq.s32.totalorder %s27, 3
      %p71 = por %p69, %p70
      %p72 = scmp.ne.s32.totalorder %s61, %s62
      %p73 = scmp.eq.s32.totalorder %s27, 0
      %p74 = por %p72, %p73
      %p75 = scmp.ne.s32.totalorder %s61, %s62
      %p76 = scmp.eq.s32.totalorder %s28, 3
      %p77 = por %p75, %p76
      %p79 = scmp.ne.s32.totalorder %s62, %s78
      %p80 = scmp.eq.s32.totalorder %s28, 0
      %p81 = por %p79, %p80
      %s82 = ssub.s32 %s22, %s29
      %p83 = scmp.eq.s32.totalorder %s82, 0
      %s85 = sadd.s32 %s84, 1
      %s86 = scalar_select %p83, %s84, %s85
      %p89 = pneg %p83
      %p90 = scmp.eq.s32.totalorder %s22, 3
      %p91 = por %p89, %p90
      %p92 = scmp.ne.s32.totalorder %s84, %s87
      %p93 = scmp.eq.s32.totalorder %s22, 0
      %p94 = por %p92, %p93
      %p95 = scmp.ne.s32.totalorder %s84, %s87
      %p96 = scmp.eq.s32.totalorder %s27, 3
      %p97 = por %p95, %p96
      %p98 = scmp.ne.s32.totalorder %s87, %s88
      %p99 = scmp.eq.s32.totalorder %s27, 0
      %p100 = por %p98, %p99
      %p101 = scmp.ne.s32.totalorder %s87, %s88
      %p102 = scmp.eq.s32.totalorder %s28, 3
      %p103 = por %p101, %p102
      %p105 = scmp.ne.s32.totalorder %s88, %s104
      %p106 = scmp.eq.s32.totalorder %s28, 0
      %p107 = por %p105, %p106
      %s109 = sadd.s32 %s108, 1
      %p112 = scmp.eq.s32.totalorder %s22, 3
      %p113 = scmp.ne.s32.totalorder %s108, %s110
      %p114 = scmp.eq.s32.totalorder %s22, 0
      %p115 = por %p113, %p114
      %p116 = scmp.ne.s32.totalorder %s108, %s110
      %p117 = scmp.eq.s32.totalorder %s27, 3
      %p118 = por %p116, %p117
      %p119 = scmp.ne.s32.totalorder %s110, %s111
      %p120 = scmp.eq.s32.totalorder %s27, 0
      %p121 = por %p119, %p120
      %p122 = scmp.ne.s32.totalorder %s110, %s111
      %p123 = scmp.eq.s32.totalorder %s28, 3
      %p124 = por %p122, %p123
      %p126 = scmp.ne.s32.totalorder %s111, %s125
      %p127 = scmp.eq.s32.totalorder %s28, 0
      %p128 = por %p126, %p127
      %s130 = sadd.s32 %s129, 1
      %p133 = scmp.eq.s32.totalorder %s22, 3
      %p134 = scmp.ne.s32.totalorder %s129, %s131
      %p135 = scmp.eq.s32.totalorder %s22, 0
      %p136 = por %p134, %p135
      %p137 = scmp.ne.s32.totalorder %s129, %s131
      %p138 = scmp.eq.s32.totalorder %s27, 3
      %p139 = por %p137, %p138
      %p140 = scmp.ne.s32.totalorder %s131, %s132
      %p141 = scmp.eq.s32.totalorder %s27, 0
      %p142 = por %p140, %p141
      %p143 = scmp.ne.s32.totalorder %s131, %s132
      %p144 = scmp.eq.s32.totalorder %s28, 3
      %p145 = por %p143, %p144
      %p147 = scmp.ne.s32.totalorder %s132, %s146
      %p148 = scmp.eq.s32.totalorder %s28, 0
      %p149 = por %p147, %p148
      %s151 = sadd.s32 %s150, 1
      %p154 = scmp.eq.s32.totalorder %s22, 3
      %p155 = scmp.ne.s32.totalorder %s150, %s152
      %p156 = scmp.eq.s32.totalorder %s22, 0
      %p157 = por %p155, %p156
      %p158 = scmp.ne.s32.totalorder %s150, %s152
      %p159 = scmp.eq.s32.totalorder %s27, 3
      %p160 = por %p158, %p159
      %p161 = scmp.ne.s32.totalorder %s152, %s153
      %p162 = scmp.eq.s32.totalorder %s27, 0
      %p163 = por %p161, %p162
      %p164 = scmp.ne.s32.totalorder %s152, %s153
      %p165 = scmp.eq.s32.totalorder %s28, 3
      %p166 = por %p164, %p165
      %p168 = scmp.ne.s32.totalorder %s153, %s167
      %p169 = scmp.eq.s32.totalorder %s28, 0
      %p170 = por %p168, %p169
      %s171 = ssub.s32 %s22, %s29
      %p172 = scmp.eq.s32.totalorder %s171, 0
      %s174 = sadd.s32 %s173, 1
      %s175 = scalar_select %p172, %s173, %s174
      %p178 = pneg %p172
      %p179 = scmp.eq.s32.totalorder %s22, 3
      %p180 = por %p178, %p179
      %p181 = scmp.ne.s32.totalorder %s173, %s176
      %p182 = scmp.eq.s32.totalorder %s22, 0
      %p183 = por %p181, %p182
      %p184 = scmp.ne.s32.totalorder %s173, %s176
      %p185 = scmp.eq.s32.totalorder %s27, 3
      %p186 = por %p184, %p185
      %p187 = scmp.ne.s32.totalorder %s176, %s177
      %p188 = scmp.eq.s32.totalorder %s27, 0
      %p189 = por %p187, %p188
      %p190 = scmp.ne.s32.totalorder %s176, %s177
      %p191 = scmp.eq.s32.totalorder %s28, 3
      %p192 = por %p190, %p191
      %p194 = scmp.ne.s32.totalorder %s177, %s193
      %p195 = scmp.eq.s32.totalorder %s28, 0
      %p196 = por %p194, %p195
      %p197 = scmp.le.s32.totalorder 1, %s22
      %p198 = scmp.lt.s32.totalorder %s22, 5
      %p199 = pnand %p197, %p198
      %p200 = pneg %p199
      // Predicated region
      $region9: #{tpu_custom_call.1} parent=5 // pred_check
        _
      $region10: #{tpu_custom_call.1} parent=5 // pred_check_branch
        %202 = sbr.rel (%p199) target = $region12
      $region11: #{tpu_custom_call.1} parent=5 // pred_region
        %s203 = ssub.s32 %s22, 1
        // Predicated region
        $region13: #{tpu_custom_call.1} parent=11 // pred_check
          %p204 = pneg %p121
        $region14: #{tpu_custom_call.1} parent=11 // pred_check_branch
          %206 = sbr.rel (%p204) target = $region16
        $region15: #{tpu_custom_call.1} parent=11 // pred_region
          %s208 = ssub.s32 2048, 2048
          %209 = vsyncadd [#allocation9], %s208
          %s210 = sshll.u32 [#allocation8], 4
          %s211 = int_to_ptr.vmem [resolvable:$true] %s210
          %216 = dma.hbm_to_vmem [thread:$0]  %s3, 2048, %s211, [#allocation9], 64, 64, 4
        $region16: #{tpu_custom_call.1} parent=11 // pred_fallthru
          _
        // Predicated region
        $region17: #{tpu_custom_call.1} parent=11 // pred_check
          %p217 = pneg %p142
        $region18: #{tpu_custom_call.1} parent=11 // pred_check_branch
          %219 = sbr.rel (%p217) target = $region20
        $region19: #{tpu_custom_call.1} parent=11 // pred_region
          _
        $region20: #{tpu_custom_call.1} parent=11 // pred_fallthru
          _
        // Predicated region
        $region21: #{tpu_custom_call.1} parent=11 // pred_check
          %p220 = pneg %p163
        $region22: #{tpu_custom_call.1} parent=11 // pred_check_branch
          %222 = sbr.rel (%p220) target = $region24
        $region23: #{tpu_custom_call.1} parent=11 // pred_region
          %s224 = ssub.s32 2048, 2048
          %225 = vsyncadd [#allocation9], %s224
          %s226 = sshll.u32 [#allocation10], 4
          %s227 = int_to_ptr.vmem [resolvable:$true] %s226
          %232 = dma.hbm_to_vmem [thread:$0]  %s5, 2048, %s227, [#allocation9], 128, 128, 8
        $region24: #{tpu_custom_call.1} parent=11 // pred_fallthru
          _
      $region12: #{tpu_custom_call.1} parent=5 // pred_fallthru
        _
      %p233 = scmp.lt.s32.totalorder %s22, 4
      // Predicated region
      $region25: #{tpu_custom_call.1} parent=5 // pred_check
        %p234 = pneg %p233
      $region26: #{tpu_custom_call.1} parent=5 // pred_check_branch
        %236 = sbr.rel (%p234) target = $region28
      $region27: #{tpu_custom_call.1} parent=5 // pred_region
        // Predicated region
        $region29: #{tpu_custom_call.1} parent=27 // pred_check
          %p237 = pneg %p42
        $region30: #{tpu_custom_call.1} parent=27 // pred_check_branch
          %239 = sbr.rel (%p237) target = $region32
        $region31: #{tpu_custom_call.1} parent=27 // pred_region
          %s240 = sand.u32 %s32, 1
          %s241 = scalar_lea.sflag [#allocation3], %s240
          %s242 = sand.u32 %s32, 1
          %s243 = smul.addr %s242, 256
          %s244 = scalar_lea.vmem [#allocation2], %s243
          %s245 = smul.u32 32, %s22
          %s246 = ssub.s32 125, %s245
          %p247 = scmp.lt.s32.totalorder %s246, 32
          %s248 = scalar_select %p247, %s246, 32
          %s249 = smul.u32 128, %s248
          %s251 = ssub.s32 4096, %s249
          %252 = vsyncadd %s241, %s251
          %p253 = scmp.ne.s32.totalorder 0, %s249
          %s254 = smul.addr %s245, 128
          %s255 = scalar_lea.hbm %s0, %s254
          %s256 = smul.u32 8, %s248
          %s257 = sshll.u32 %s244, 4
          %s258 = int_to_ptr.vmem [resolvable:$true] %s257
          %s259 = sshll.u32 %s256, 4
          %263 = dma.hbm_to_vmem [thread:$0]  (%p253), %s255, %s259, %s258, %s241, 128, 128, 8
        $region32: #{tpu_custom_call.1} parent=27 // pred_fallthru
          _
        // Predicated region
        $region33: #{tpu_custom_call.1} parent=27 // pred_check
          %p264 = pneg %p68
        $region34: #{tpu_custom_call.1} parent=27 // pred_check_branch
          %266 = sbr.rel (%p264) target = $region36
        $region35: #{tpu_custom_call.1} parent=27 // pred_region
          %s267 = sand.u32 %s22, 1
          %s268 = scalar_lea.sflag [#allocation6], %s267
          %s269 = sand.u32 %s58, 1
          %s270 = smul.addr %s269, 256
          %s271 = scalar_lea.vmem [#allocation5], %s270
          %s272 = smul.u32 32, %s22
          %s273 = ssub.s32 125, %s272
          %p274 = scmp.lt.s32.totalorder %s273, 32
          %s275 = scalar_select %p274, %s273, 32
          %s276 = smul.u32 64, %s275
          %s277 = smul.u32 %s276, 2
          %s279 = ssub.s32 4096, %s277
          %280 = vsyncadd %s268, %s279
          %p281 = scmp.ne.s32.totalorder 0, %s277
          %s282 = smul.addr %s272, 2
          %s283 = smul.addr %s282, 64
          %s284 = scalar_lea.hbm %s1, %s283
          %s285 = smul.u32 8, %s275
          %s286 = sshll.u32 %s271, 4
          %s287 = int_to_ptr.vmem [resolvable:$true] %s286
          %s288 = sshll.u32 %s285, 4
          %292 = dma.hbm_to_vmem [thread:$0]  (%p281), %s284, %s288, %s287, %s268, 128, 128, 8
        $region36: #{tpu_custom_call.1} parent=27 // pred_fallthru
          _
        // Predicated region
        $region37: #{tpu_custom_call.1} parent=27 // pred_check
          %p293 = pneg %p94
        $region38: #{tpu_custom_call.1} parent=27 // pred_check_branch
          %295 = sbr.rel (%p293) target = $region40
        $region39: #{tpu_custom_call.1} parent=27 // pred_region
          %s296 = sand.u32 %s22, 1
          %s297 = scalar_lea.sflag [#allocation6], %s296
          %s298 = sand.u32 %s84, 1
          %s299 = smul.addr %s298, 256
          %s300 = scalar_lea.vmem [#allocation7], %s299
          %s301 = smul.u32 32, %s22
          %s302 = ssub.s32 125, %s301
          %p303 = scmp.lt.s32.totalorder %s302, 32
          %s304 = scalar_select %p303, %s302, 32
          %s305 = smul.u32 128, %s304
          %s307 = ssub.s32 4096, %s305
          %308 = vsyncadd %s297, %s307
          %p309 = scmp.ne.s32.totalorder 0, %s305
          %s310 = smul.addr %s301, 128
          %s311 = scalar_lea.hbm %s2, %s310
          %s312 = smul.u32 8, %s304
          %s313 = sshll.u32 %s300, 4
          %s314 = int_to_ptr.vmem [resolvable:$true] %s313
          %s315 = sshll.u32 %s312, 4
          %319 = dma.hbm_to_vmem [thread:$0]  (%p309), %s311, %s315, %s314, %s297, 128, 128, 8
        $region40: #{tpu_custom_call.1} parent=27 // pred_fallthru
          _
      $region28: #{tpu_custom_call.1} parent=5 // pred_fallthru
        _
      %p320 = scmp.le.s32.totalorder 1, %s22
      %p321 = scmp.lt.s32.totalorder %s22, 5
      %p322 = pnand %p320, %p321
      %p323 = pneg %p322
      // Predicated region
      $region41: #{tpu_custom_call.1} parent=5 // pred_check
        _
      $region42: #{tpu_custom_call.1} parent=5 // pred_check_branch
        %325 = sbr.rel (%p322) target = $region44
      $region43: #{tpu_custom_call.1} parent=5 // pred_region
        %s326 = ssub.s32 %s22, 1
        %s327 = sand.u32 %s35, 1
        %s328 = scalar_lea.sflag [#allocation3], %s327
        %s329 = sand.u32 %s35, 1
        %s330 = smul.addr %s329, 256
        %s331 = scalar_lea.vmem [#allocation2], %s330
        // Predicated region
        $region45: #{tpu_custom_call.1} parent=43 // pred_check
          %p332 = pneg %p48
        $region46: #{tpu_custom_call.1} parent=43 // pred_check_branch
          %334 = sbr.rel (%p332) target = $region48
        $region47: #{tpu_custom_call.1} parent=43 // pred_region
          %335 = dma.done %s328, 4096
        $region48: #{tpu_custom_call.1} parent=43 // pred_fallthru
          _
        %s336 = sand.u32 %s27, 1
        %s337 = scalar_lea.sflag [#allocation6], %s336
        %s338 = sand.u32 %s61, 1
        %s339 = smul.addr %s338, 256
        %s340 = scalar_lea.vmem [#allocation5], %s339
        // Predicated region
        $region49: #{tpu_custom_call.1} parent=43 // pred_check
          %p341 = pneg %p74
        $region50: #{tpu_custom_call.1} parent=43 // pred_check_branch
          %343 = sbr.rel (%p341) target = $region52
        $region51: #{tpu_custom_call.1} parent=43 // pred_region
          %344 = dma.done %s337, 4096
        $region52: #{tpu_custom_call.1} parent=43 // pred_fallthru
          _
        %s345 = sand.u32 %s27, 1
        %s346 = scalar_lea.sflag [#allocation6], %s345
        %s347 = sand.u32 %s87, 1
        %s348 = smul.addr %s347, 256
        %s349 = scalar_lea.vmem [#allocation7], %s348
        // Predicated region
        $region53: #{tpu_custom_call.1} parent=43 // pred_check
          %p350 = pneg %p100
        $region54: #{tpu_custom_call.1} parent=43 // pred_check_branch
          %352 = sbr.rel (%p350) target = $region56
        $region55: #{tpu_custom_call.1} parent=43 // pred_region
          %353 = dma.done %s346, 4096
        $region56: #{tpu_custom_call.1} parent=43 // pred_fallthru
          _
        // Predicated region
        $region57: #{tpu_custom_call.1} parent=43 // pred_check
          %p354 = pneg %p121
        $region58: #{tpu_custom_call.1} parent=43 // pred_check_branch
          %356 = sbr.rel (%p354) target = $region60
        $region59: #{tpu_custom_call.1} parent=43 // pred_region
          %357 = dma.done [#allocation9], 2048
        $region60: #{tpu_custom_call.1} parent=43 // pred_fallthru
          _
        // Predicated region
        $region61: #{tpu_custom_call.1} parent=43 // pred_check
          %p358 = pneg %p163
        $region62: #{tpu_custom_call.1} parent=43 // pred_check_branch
          %360 = sbr.rel (%p358) target = $region64
        $region63: #{tpu_custom_call.1} parent=43 // pred_region
          %361 = dma.done [#allocation9], 2048
        $region64: #{tpu_custom_call.1} parent=43 // pred_fallthru
          _
        %s362 = sand.u32 %s35, 1
        %s363 = scalar_lea.sflag [#allocation3], %s362
        %s364 = sand.u32 %s35, 1
        %s365 = smul.addr %s364, 256
        %s366 = scalar_lea.vmem [#allocation2], %s365
        %p367 = pneg %p48
        %p368 = pneg %p45
        %s369 = sand.u32 %s27, 1
        %s370 = scalar_lea.sflag [#allocation6], %s369
        %s371 = sand.u32 %s61, 1
        %s372 = smul.addr %s371, 256
        %s373 = scalar_lea.vmem [#allocation5], %s372
        %p374 = pneg %p74
        %p375 = pneg %p71
        %s376 = sand.u32 %s27, 1
        %s377 = scalar_lea.sflag [#allocation6], %s376
        %s378 = sand.u32 %s87, 1
        %s379 = smul.addr %s378, 256
        %s380 = scalar_lea.vmem [#allocation7], %s379
        %p381 = pneg %p100
        %p382 = pneg %p97
        %p383 = pneg %p121
        %p384 = pneg %p118
        %p385 = pneg %p142
        %p386 = pneg %p139
        %p387 = pneg %p163
        %p388 = pneg %p160
        %p389 = pneg %p189
        %p390 = pneg %p186
        %s391 = sand.u32 %s176, 1
        %s392 = scalar_lea.sflag [#allocation4], %s391
        %s393 = sand.u32 %s176, 1
        %s394 = smul.addr %s393, 512
        %s395 = scalar_lea.vmem [#allocation11], %s394
        %s396 = smul.u32 32, %s27
        %s397 = ssub.s32 125, %s396
        %p398 = scmp.lt.s32.totalorder %s397, 32
        %s399 = scalar_select %p398, %s397, 32
        %s400 = smul.u32 128, %s399
        %s401 = smul.u32 32, %s27
        %s402 = ssub.s32 125, %s401
        %p403 = scmp.lt.s32.totalorder %s402, 32
        %s404 = scalar_select %p403, %s402, 32
        %s405 = smul.u32 64, %s404
        %s406 = smul.u32 %s405, 2
        %s407 = smul.u32 32, %s27
        %s408 = ssub.s32 125, %s407
        %p409 = scmp.lt.s32.totalorder %s408, 32
        %s410 = scalar_select %p409, %s408, 32
        %s411 = smul.u32 128, %s410
        %s412 = smul.u32 32, %s27
        %s413 = ssub.s32 125, %s412
        %p414 = scmp.lt.s32.totalorder %s413, 32
        %s415 = scalar_select %p414, %s413, 32
        %s416 = smul.u32 128, %s415
        %s417 = smul.u32 %s416, 2
        %v419 = vld [vmem:[%s340] sm:$0xff]
        %v420 = vld [vmem:[%s340 + $0x8] sm:$0xff]
        %v421 = vld [vmem:[%s340 + $0x10] sm:$0xff]
        %v422 = vld [vmem:[%s340 + $0x18] sm:$0xff]
        %v423 = vld [vmem:[%s340 + $0x20] sm:$0xff]
        %v424 = vld [vmem:[%s340 + $0x28] sm:$0xff]
        %v425 = vld [vmem:[%s340 + $0x30] sm:$0xff]
        %v426 = vld [vmem:[%s340 + $0x38] sm:$0xff]
        %v427 = vld [vmem:[%s340 + $0x40] sm:$0xff]
        %v428 = vld [vmem:[%s340 + $0x48] sm:$0xff]
        %v429 = vld [vmem:[%s340 + $0x50] sm:$0xff]
        %v430 = vld [vmem:[%s340 + $0x58] sm:$0xff]
        %v431 = vld [vmem:[%s340 + $0x60] sm:$0xff]
        %v432 = vld [vmem:[%s340 + $0x68] sm:$0xff]
        %v433 = vld [vmem:[%s340 + $0x70] sm:$0xff]
        %v434 = vld [vmem:[%s340 + $0x78] sm:$0xff]
        %v435 = vld [vmem:[%s340 + $0x80] sm:$0xff]
        %v436 = vld [vmem:[%s340 + $0x88] sm:$0xff]
        %v437 = vld [vmem:[%s340 + $0x90] sm:$0xff]
        %v438 = vld [vmem:[%s340 + $0x98] sm:$0xff]
        %v439 = vld [vmem:[%s340 + $0xa0] sm:$0xff]
        %v440 = vld [vmem:[%s340 + $0xa8] sm:$0xff]
        %v441 = vld [vmem:[%s340 + $0xb0] sm:$0xff]
        %v442 = vld [vmem:[%s340 + $0xb8] sm:$0xff]
        %v443 = vld [vmem:[%s340 + $0xc0] sm:$0xff]
        %v444 = vld [vmem:[%s340 + $0xc8] sm:$0xff]
        %v445 = vld [vmem:[%s340 + $0xd0] sm:$0xff]
        %v446 = vld [vmem:[%s340 + $0xd8] sm:$0xff]
        %v447 = vld [vmem:[%s340 + $0xe0] sm:$0xff]
        %v448 = vld [vmem:[%s340 + $0xe8] sm:$0xff]
        %v449 = vld [vmem:[%s340 + $0xf0] sm:$0xff]
        %v450 = vld [vmem:[%s340 + $0xf8] sm:$0xff]
        %v451 = vld [vmem:[#allocation8] sm:$0xf]
        %v452 = vld [vmem:[#allocation8 + $0x4] sm:$0xf]
        %v453 = vld [vmem:[#allocation8 + $0x8] sm:$0xf]
        %v454 = vld [vmem:[#allocation8 + $0xc] sm:$0xf]
        %v455 = vld [vmem:[#allocation8 + $0x10] sm:$0xf]
        %v456 = vld [vmem:[#allocation8 + $0x14] sm:$0xf]
        %v457 = vld [vmem:[#allocation8 + $0x18] sm:$0xf]
        %v458 = vld [vmem:[#allocation8 + $0x1c] sm:$0xf]
        %v459 = vld [vmem:[#allocation8 + $0x20] sm:$0xf]
        %v460 = vld [vmem:[#allocation8 + $0x24] sm:$0xf]
        %v461 = vld [vmem:[#allocation8 + $0x28] sm:$0xf]
        %v462 = vld [vmem:[#allocation8 + $0x2c] sm:$0xf]
        %v463 = vld [vmem:[#allocation8 + $0x30] sm:$0xf]
        %v464 = vld [vmem:[#allocation8 + $0x34] sm:$0xf]
        %v465 = vld [vmem:[#allocation8 + $0x38] sm:$0xf]
        %v466 = vld [vmem:[#allocation8 + $0x3c] sm:$0xf]
        %v467 = vld [vmem:[#allocation8 + $0x40] sm:$0xf]
        %v468 = vld [vmem:[#allocation8 + $0x44] sm:$0xf]
        %v469 = vld [vmem:[#allocation8 + $0x48] sm:$0xf]
        %v470 = vld [vmem:[#allocation8 + $0x4c] sm:$0xf]
        %v471 = vld [vmem:[#allocation8 + $0x50] sm:$0xf]
        %v472 = vld [vmem:[#allocation8 + $0x54] sm:$0xf]
        %v473 = vld [vmem:[#allocation8 + $0x58] sm:$0xf]
        %v474 = vld [vmem:[#allocation8 + $0x5c] sm:$0xf]
        %v475 = vld [vmem:[#allocation8 + $0x60] sm:$0xf]
        %v476 = vld [vmem:[#allocation8 + $0x64] sm:$0xf]
        %v477 = vld [vmem:[#allocation8 + $0x68] sm:$0xf]
        %v478 = vld [vmem:[#allocation8 + $0x6c] sm:$0xf]
        %v479 = vld [vmem:[#allocation8 + $0x70] sm:$0xf]
        %v480 = vld [vmem:[#allocation8 + $0x74] sm:$0xf]
        %v481 = vld [vmem:[#allocation8 + $0x78] sm:$0xf]
        %v482 = vld [vmem:[#allocation8 + $0x7c] sm:$0xf]
        %v515 = vunpack.c.l.b16 %v419
        %v516 = vunpack.c.h.b16 %v419
        %v517 = vunpack.c.l.b16 %v420
        %v518 = vunpack.c.h.b16 %v420
        %v519 = vunpack.c.l.b16 %v421
        %v520 = vunpack.c.h.b16 %v421
        %v521 = vunpack.c.l.b16 %v422
        %v522 = vunpack.c.h.b16 %v422
        %v523 = vunpack.c.l.b16 %v423
        %v524 = vunpack.c.h.b16 %v423
        %v525 = vunpack.c.l.b16 %v424
        %v526 = vunpack.c.h.b16 %v424
        %v527 = vunpack.c.l.b16 %v425
        %v528 = vunpack.c.h.b16 %v425
        %v529 = vunpack.c.l.b16 %v426
        %v530 = vunpack.c.h.b16 %v426
        %v531 = vunpack.c.l.b16 %v427
        %v532 = vunpack.c.h.b16 %v427
        %v533 = vunpack.c.l.b16 %v428
        %v534 = vunpack.c.h.b16 %v428
        %v535 = vunpack.c.l.b16 %v429
        %v536 = vunpack.c.h.b16 %v429
        %v537 = vunpack.c.l.b16 %v430
        %v538 = vunpack.c.h.b16 %v430
        %v539 = vunpack.c.l.b16 %v431
        %v540 = vunpack.c.h.b16 %v431
        %v541 = vunpack.c.l.b16 %v432
        %v542 = vunpack.c.h.b16 %v432
        %v543 = vunpack.c.l.b16 %v433
        %v544 = vunpack.c.h.b16 %v433
        %v545 = vunpack.c.l.b16 %v434
        %v546 = vunpack.c.h.b16 %v434
        %v547 = vunpack.c.l.b16 %v435
        %v548 = vunpack.c.h.b16 %v435
        %v549 = vunpack.c.l.b16 %v436
        %v550 = vunpack.c.h.b16 %v436
        %v551 = vunpack.c.l.b16 %v437
        %v552 = vunpack.c.h.b16 %v437
        %v553 = vunpack.c.l.b16 %v438
        %v554 = vunpack.c.h.b16 %v438
        %v555 = vunpack.c.l.b16 %v439
        %v556 = vunpack.c.h.b16 %v439
        %v557 = vunpack.c.l.b16 %v440
        %v558 = vunpack.c.h.b16 %v440
        %v559 = vunpack.c.l.b16 %v441
        %v560 = vunpack.c.h.b16 %v441
        %v561 = vunpack.c.l.b16 %v442
        %v562 = vunpack.c.h.b16 %v442
        %v563 = vunpack.c.l.b16 %v443
        %v564 = vunpack.c.h.b16 %v443
        %v565 = vunpack.c.l.b16 %v444
        %v566 = vunpack.c.h.b16 %v444
        %v567 = vunpack.c.l.b16 %v445
        %v568 = vunpack.c.h.b16 %v445
        %v569 = vunpack.c.l.b16 %v446
        %v570 = vunpack.c.h.b16 %v446
        %v571 = vunpack.c.l.b16 %v447
        %v572 = vunpack.c.h.b16 %v447
        %v573 = vunpack.c.l.b16 %v448
        %v574 = vunpack.c.h.b16 %v448
        %v575 = vunpack.c.l.b16 %v449
        %v576 = vunpack.c.h.b16 %v449
        %v577 = vunpack.c.l.b16 %v450
        %v578 = vunpack.c.h.b16 %v450
        %v579 = vpack.c.b16 %v517, %v515
        %v580 = vpack.c.b16 %v518, %v516
        %v581 = vpack.c.b16 %v521, %v519
        %v582 = vpack.c.b16 %v522, %v520
        %v583 = vpack.c.b16 %v525, %v523
        %v584 = vpack.c.b16 %v526, %v524
        %v585 = vpack.c.b16 %v529, %v527
        %v586 = vpack.c.b16 %v530, %v528
        %v587 = vpack.c.b16 %v533, %v531
        %v588 = vpack.c.b16 %v534, %v532
        %v589 = vpack.c.b16 %v537, %v535
        %v590 = vpack.c.b16 %v538, %v536
        %v591 = vpack.c.b16 %v541, %v539
        %v592 = vpack.c.b16 %v542, %v540
        %v593 = vpack.c.b16 %v545, %v543
        %v594 = vpack.c.b16 %v546, %v544
        %v595 = vpack.c.b16 %v549, %v547
        %v596 = vpack.c.b16 %v550, %v548
        %v597 = vpack.c.b16 %v553, %v551
        %v598 = vpack.c.b16 %v554, %v552
        %v599 = vpack.c.b16 %v557, %v555
        %v600 = vpack.c.b16 %v558, %v556
        %v601 = vpack.c.b16 %v561, %v559
        %v602 = vpack.c.b16 %v562, %v560
        %v603 = vpack.c.b16 %v565, %v563
        %v604 = vpack.c.b16 %v566, %v564
        %v605 = vpack.c.b16 %v569, %v567
        %v606 = vpack.c.b16 %v570, %v568
        %v607 = vpack.c.b16 %v573, %v571
        %v608 = vpack.c.b16 %v574, %v572
        %v609 = vpack.c.b16 %v577, %v575
        %v610 = vpack.c.b16 %v578, %v576
        %v675 = vunpack.c.l.b16 %v451
        %v676 = vunpack.c.l.b16 %v452
        %v677 = vunpack.c.l.b16 %v453
        %v678 = vunpack.c.l.b16 %v454
        %v679 = vunpack.c.l.b16 %v455
        %v680 = vunpack.c.l.b16 %v456
        %v681 = vunpack.c.l.b16 %v457
        %v682 = vunpack.c.l.b16 %v458
        %v683 = vunpack.c.l.b16 %v459
        %v684 = vunpack.c.l.b16 %v460
        %v685 = vunpack.c.l.b16 %v461
        %v686 = vunpack.c.l.b16 %v462
        %v687 = vunpack.c.l.b16 %v463
        %v688 = vunpack.c.l.b16 %v464
        %v689 = vunpack.c.l.b16 %v465
        %v690 = vunpack.c.l.b16 %v466
        %v691 = vunpack.c.l.b16 %v467
        %v692 = vunpack.c.l.b16 %v468
        %v693 = vunpack.c.l.b16 %v469
        %v694 = vunpack.c.l.b16 %v470
        %v695 = vunpack.c.l.b16 %v471
        %v696 = vunpack.c.l.b16 %v472
        %v697 = vunpack.c.l.b16 %v473
        %v698 = vunpack.c.l.b16 %v474
        %v699 = vunpack.c.l.b16 %v475
        %v700 = vunpack.c.l.b16 %v476
        %v701 = vunpack.c.l.b16 %v477
        %v702 = vunpack.c.l.b16 %v478
        %v703 = vunpack.c.l.b16 %v479
        %v704 = vunpack.c.l.b16 %v480
        %v705 = vunpack.c.l.b16 %v481
        %v706 = vunpack.c.l.b16 %v482
        %v707 = vpack.c.b16 %v676, %v675
        %v708 = vpack.c.b16 %v678, %v677
        %v709 = vpack.c.b16 %v680, %v679
        %v710 = vpack.c.b16 %v682, %v681
        %v711 = vpack.c.b16 %v684, %v683
        %v712 = vpack.c.b16 %v686, %v685
        %v713 = vpack.c.b16 %v688, %v687
        %v714 = vpack.c.b16 %v690, %v689
        %v715 = vpack.c.b16 %v692, %v691
        %v716 = vpack.c.b16 %v694, %v693
        %v717 = vpack.c.b16 %v696, %v695
        %v718 = vpack.c.b16 %v698, %v697
        %v719 = vpack.c.b16 %v700, %v699
        %v720 = vpack.c.b16 %v702, %v701
        %v721 = vpack.c.b16 %v704, %v703
        %v722 = vpack.c.b16 %v706, %v705
        %739 = vmatprep.subr.bf16.mxu0 0
        %740 = vmatpush1.bf16.msra.mxu0 %v707
        %741 = vmatprep.subr.bf16.mxu0 0
        %742 = vmatpush1.bf16.msra.mxu0 %v708
        %743 = vmatprep.subr.bf16.mxu0 0
        %744 = vmatpush1.bf16.msra.mxu0 %v709
        %745 = vmatprep.subr.bf16.mxu0 0
        %746 = vmatpush1.bf16.msra.mxu0 %v710
        %747 = vmatprep.subr.bf16.mxu0 0
        %748 = vmatpush1.bf16.msra.mxu0 %v711
        %749 = vmatprep.subr.bf16.mxu0 0
        %750 = vmatpush1.bf16.msra.mxu0 %v712
        %751 = vmatprep.subr.bf16.mxu0 0
        %752 = vmatpush1.bf16.msra.mxu0 %v713
        %753 = vmatprep.subr.bf16.mxu0 0
        %754 = vmatpush1.bf16.msra.mxu0 %v714
        %755 = vmatprep.subr.bf16.mxu0 0
        %756 = vmatpush1.bf16.msra.mxu0 %v715
        %757 = vmatprep.subr.bf16.mxu0 0
        %758 = vmatpush1.bf16.msra.mxu0 %v716
        %759 = vmatprep.subr.bf16.mxu0 0
        %760 = vmatpush1.bf16.msra.mxu0 %v717
        %761 = vmatprep.subr.bf16.mxu0 0
        %762 = vmatpush1.bf16.msra.mxu0 %v718
        %763 = vmatprep.subr.bf16.mxu0 0
        %764 = vmatpush1.bf16.msra.mxu0 %v719
        %765 = vmatprep.subr.bf16.mxu0 0
        %766 = vmatpush1.bf16.msra.mxu0 %v720
        %767 = vmatprep.subr.bf16.mxu0 0
        %768 = vmatpush1.bf16.msra.mxu0 %v721
        %769 = vmatprep.subr.bf16.mxu0 0
        %770 = vmatpush1.bf16.msra.mxu0 %v722
        %771 = vmatprep.mubr.bf16.mxu0 %v580
        %772 = vmatmul.mubr.bf16.gmra.mrb[0].mxu0 %v579
        %v773 = vpop.f32.mrb[0].mxu0
        %v774 = vadd.f32 0.0, %v773
        %v775 = vpop.f32.mrb[0].mxu0
        %v776 = vpop.f32.mrb[0].mxu0
        %v777 = vadd.f32 0.0, %v776
        %v778 = vpop.f32.mrb[0].mxu0
        %779 = vmatprep.mubr.bf16.mxu0 %v582
        %780 = vmatmul.mubr.bf16.gmra.mrb[0].mxu0 %v581
        %v781 = vpop.f32.mrb[0].mxu0
        %v782 = vadd.f32 0.0, %v781
        %v783 = vpop.f32.mrb[0].mxu0
        %v784 = vpop.f32.mrb[0].mxu0
        %v785 = vadd.f32 0.0, %v784
        %v786 = vpop.f32.mrb[0].mxu0
        %787 = vmatprep.mubr.bf16.mxu0 %v584
        %788 = vmatmul.mubr.bf16.gmra.mrb[0].mxu0 %v583
        %v789 = vpop.f32.mrb[0].mxu0
        %v790 = vadd.f32 0.0, %v789
        %v791 = vpop.f32.mrb[0].mxu0
        %v792 = vpop.f32.mrb[0].mxu0
        %v793 = vadd.f32 0.0, %v792
        %v794 = vpop.f32.mrb[0].mxu0
        %795 = vmatprep.mubr.bf16.mxu0 %v586
        %796 = vmatmul.mubr.bf16.gmra.mrb[0].mxu0 %v585
        %v797 = vpop.f32.mrb[0].mxu0
        %v798 = vadd.f32 0.0, %v797
        %v799 = vpop.f32.mrb[0].mxu0
        %v800 = vpop.f32.mrb[0].mxu0
        %v801 = vadd.f32 0.0, %v800
        %v802 = vpop.f32.mrb[0].mxu0
        %803 = vmatprep.mubr.bf16.mxu0 %v588
        %804 = vmatmul.mubr.bf16.gmra.mrb[0].mxu0 %v587
        %v805 = vpop.f32.mrb[0].mxu0
        %v806 = vadd.f32 0.0, %v805
        %v807 = vpop.f32.mrb[0].mxu0
        %v808 = vpop.f32.mrb[0].mxu0
        %v809 = vadd.f32 0.0, %v808
        %v810 = vpop.f32.mrb[0].mxu0
        %811 = vmatprep.mubr.bf16.mxu0 %v590
        %812 = vmatmul.mubr.bf16.gmra.mrb[0].mxu0 %v589
        %v813 = vpop.f32.mrb[0].mxu0
        %v814 = vadd.f32 0.0, %v813
        %v815 = vpop.f32.mrb[0].mxu0
        %v816 = vpop.f32.mrb[0].mxu0
        %v817 = vadd.f32 0.0, %v816
        %v818 = vpop.f32.mrb[0].mxu0
        %819 = vmatprep.mubr.bf16.mxu0 %v592
        %820 = vmatmul.mubr.bf16.gmra.mrb[0].mxu0 %v591
        %v821 = vpop.f32.mrb[0].mxu0
        %v822 = vadd.f32 0.0, %v821
        %v823 = vpop.f32.mrb[0].mxu0
        %v824 = vpop.f32.mrb[0].mxu0
        %v825 = vadd.f32 0.0, %v824
        %v826 = vpop.f32.mrb[0].mxu0
        %827 = vmatprep.mubr.bf16.mxu0 %v594
        %828 = vmatmul.mubr.bf16.gmra.mrb[0].mxu0 %v593
        %v829 = vpop.f32.mrb[0].mxu0
        %v830 = vadd.f32 0.0, %v829
        %v831 = vpop.f32.mrb[0].mxu0
        %v832 = vpop.f32.mrb[0].mxu0
        %v833 = vadd.f32 0.0, %v832
        %v834 = vpop.f32.mrb[0].mxu0
        %835 = vmatprep.mubr.bf16.mxu0 %v596
        %836 = vmatmul.mubr.bf16.gmra.mrb[0].mxu0 %v595
        %v837 = vpop.f32.mrb[0].mxu0
        %v838 = vadd.f32 0.0, %v837
        %v839 = vpop.f32.mrb[0].mxu0
        %v840 = vpop.f32.mrb[0].mxu0
        %v841 = vadd.f32 0.0, %v840
        %v842 = vpop.f32.mrb[0].mxu0
        %843 = vmatprep.mubr.bf16.mxu0 %v598
        %844 = vmatmul.mubr.bf16.gmra.mrb[0].mxu0 %v597
        %v845 = vpop.f32.mrb[0].mxu0
        %v846 = vadd.f32 0.0, %v845
        %v847 = vpop.f32.mrb[0].mxu0
        %v848 = vpop.f32.mrb[0].mxu0
        %v849 = vadd.f32 0.0, %v848
        %v850 = vpop.f32.mrb[0].mxu0
        %851 = vmatprep.mubr.bf16.mxu0 %v600
        %852 = vmatmul.mubr.bf16.gmra.mrb[0].mxu0 %v599
        %v853 = vpop.f32.mrb[0].mxu0
        %v854 = vadd.f32 0.0, %v853
        %v855 = vpop.f32.mrb[0].mxu0
        %v856 = vpop.f32.mrb[0].mxu0
        %v857 = vadd.f32 0.0, %v856
        %v858 = vpop.f32.mrb[0].mxu0
        %859 = vmatprep.mubr.bf16.mxu0 %v602
        %860 = vmatmul.mubr.bf16.gmra.mrb[0].mxu0 %v601
        %v861 = vpop.f32.mrb[0].mxu0
        %v862 = vadd.f32 0.0, %v861
        %v863 = vpop.f32.mrb[0].mxu0
        %v864 = vpop.f32.mrb[0].mxu0
        %v865 = vadd.f32 0.0, %v864
        %v866 = vpop.f32.mrb[0].mxu0
        %867 = vmatprep.mubr.bf16.mxu0 %v604
        %868 = vmatmul.mubr.bf16.gmra.mrb[0].mxu0 %v603
        %v869 = vpop.f32.mrb[0].mxu0
        %v870 = vadd.f32 0.0, %v869
        %v871 = vpop.f32.mrb[0].mxu0
        %v872 = vpop.f32.mrb[0].mxu0
        %v873 = vadd.f32 0.0, %v872
        %v874 = vpop.f32.mrb[0].mxu0
        %875 = vmatprep.mubr.bf16.mxu0 %v606
        %876 = vmatmul.mubr.bf16.gmra.mrb[0].mxu0 %v605
        %v877 = vpop.f32.mrb[0].mxu0
        %v878 = vadd.f32 0.0, %v877
        %v879 = vpop.f32.mrb[0].mxu0
        %v880 = vpop.f32.mrb[0].mxu0
        %v881 = vadd.f32 0.0, %v880
        %v882 = vpop.f32.mrb[0].mxu0
        %883 = vmatprep.mubr.bf16.mxu0 %v608
        %884 = vmatmul.mubr.bf16.gmra.mrb[0].mxu0 %v607
        %v885 = vpop.f32.mrb[0].mxu0
        %v886 = vadd.f32 0.0, %v885
        %v887 = vpop.f32.mrb[0].mxu0
        %v888 = vpop.f32.mrb[0].mxu0
        %v889 = vadd.f32 0.0, %v888
        %v890 = vpop.f32.mrb[0].mxu0
        %891 = vmatprep.mubr.bf16.mxu0 %v610
        %892 = vmatmul.mubr.bf16.gmra.mrb[0].mxu0 %v609
        %v893 = vpop.f32.mrb[0].mxu0
        %v894 = vadd.f32 0.0, %v893
        %v895 = vpop.f32.mrb[0].mxu0
        %v896 = vpop.f32.mrb[0].mxu0
        %v897 = vadd.f32 0.0, %v896
        %v898 = vpop.f32.mrb[0].mxu0
        %899 = vdwg.mxu0
        %v900 = vld [vmem:[%s331] sm:$0xff]
        %v901 = vld [vmem:[%s331 + $0x8] sm:$0xff]
        %v902 = vld [vmem:[%s331 + $0x10] sm:$0xff]
        %v903 = vld [vmem:[%s331 + $0x18] sm:$0xff]
        %v904 = vld [vmem:[%s331 + $0x20] sm:$0xff]
        %v905 = vld [vmem:[%s331 + $0x28] sm:$0xff]
        %v906 = vld [vmem:[%s331 + $0x30] sm:$0xff]
        %v907 = vld [vmem:[%s331 + $0x38] sm:$0xff]
        %v908 = vld [vmem:[%s331 + $0x40] sm:$0xff]
        %v909 = vld [vmem:[%s331 + $0x48] sm:$0xff]
        %v910 = vld [vmem:[%s331 + $0x50] sm:$0xff]
        %v911 = vld [vmem:[%s331 + $0x58] sm:$0xff]
        %v912 = vld [vmem:[%s331 + $0x60] sm:$0xff]
        %v913 = vld [vmem:[%s331 + $0x68] sm:$0xff]
        %v914 = vld [vmem:[%s331 + $0x70] sm:$0xff]
        %v915 = vld [vmem:[%s331 + $0x78] sm:$0xff]
        %v916 = vld [vmem:[%s331 + $0x80] sm:$0xff]
        %v917 = vld [vmem:[%s331 + $0x88] sm:$0xff]
        %v918 = vld [vmem:[%s331 + $0x90] sm:$0xff]
        %v919 = vld [vmem:[%s331 + $0x98] sm:$0xff]
        %v920 = vld [vmem:[%s331 + $0xa0] sm:$0xff]
        %v921 = vld [vmem:[%s331 + $0xa8] sm:$0xff]
        %v922 = vld [vmem:[%s331 + $0xb0] sm:$0xff]
        %v923 = vld [vmem:[%s331 + $0xb8] sm:$0xff]
        %v924 = vld [vmem:[%s331 + $0xc0] sm:$0xff]
        %v925 = vld [vmem:[%s331 + $0xc8] sm:$0xff]
        %v926 = vld [vmem:[%s331 + $0xd0] sm:$0xff]
        %v927 = vld [vmem:[%s331 + $0xd8] sm:$0xff]
        %v928 = vld [vmem:[%s331 + $0xe0] sm:$0xff]
        %v929 = vld [vmem:[%s331 + $0xe8] sm:$0xff]
        %v930 = vld [vmem:[%s331 + $0xf0] sm:$0xff]
        %v931 = vld [vmem:[%s331 + $0xf8] sm:$0xff]
        %v932 = vsub.f32 %v900, %v774
        %v933 = vsub.f32 %v901, %v777
        %v934 = vsub.f32 %v902, %v782
        %v935 = vsub.f32 %v903, %v785
        %v936 = vsub.f32 %v904, %v790
        %v937 = vsub.f32 %v905, %v793
        %v938 = vsub.f32 %v906, %v798
        %v939 = vsub.f32 %v907, %v801
        %v940 = vsub.f32 %v908, %v806
        %v941 = vsub.f32 %v909, %v809
        %v942 = vsub.f32 %v910, %v814
        %v943 = vsub.f32 %v911, %v817
        %v944 = vsub.f32 %v912, %v822
        %v945 = vsub.f32 %v913, %v825
        %v946 = vsub.f32 %v914, %v830
        %v947 = vsub.f32 %v915, %v833
        %v948 = vsub.f32 %v916, %v838
        %v949 = vsub.f32 %v917, %v841
        %v950 = vsub.f32 %v918, %v846
        %v951 = vsub.f32 %v919, %v849
        %v952 = vsub.f32 %v920, %v854
        %v953 = vsub.f32 %v921, %v857
        %v954 = vsub.f32 %v922, %v862
        %v955 = vsub.f32 %v923, %v865
        %v956 = vsub.f32 %v924, %v870
        %v957 = vsub.f32 %v925, %v873
        %v958 = vsub.f32 %v926, %v878
        %v959 = vsub.f32 %v927, %v881
        %v960 = vsub.f32 %v928, %v886
        %v961 = vsub.f32 %v929, %v889
        %v962 = vsub.f32 %v930, %v894
        %v963 = vsub.f32 %v931, %v897
        %v964 = vld [vmem:[%s4] sm:$0x1]
        %v965 = vld [vmem:[%s349] sm:$0xff]
        %v966 = vld [vmem:[%s349 + $0x8] sm:$0xff]
        %v967 = vld [vmem:[%s349 + $0x10] sm:$0xff]
        %v968 = vld [vmem:[%s349 + $0x18] sm:$0xff]
        %v969 = vld [vmem:[%s349 + $0x20] sm:$0xff]
        %v970 = vld [vmem:[%s349 + $0x28] sm:$0xff]
        %v971 = vld [vmem:[%s349 + $0x30] sm:$0xff]
        %v972 = vld [vmem:[%s349 + $0x38] sm:$0xff]
        %v973 = vld [vmem:[%s349 + $0x40] sm:$0xff]
        %v974 = vld [vmem:[%s349 + $0x48] sm:$0xff]
        %v975 = vld [vmem:[%s349 + $0x50] sm:$0xff]
        %v976 = vld [vmem:[%s349 + $0x58] sm:$0xff]
        %v977 = vld [vmem:[%s349 + $0x60] sm:$0xff]
        %v978 = vld [vmem:[%s349 + $0x68] sm:$0xff]
        %v979 = vld [vmem:[%s349 + $0x70] sm:$0xff]
        %v980 = vld [vmem:[%s349 + $0x78] sm:$0xff]
        %v981 = vld [vmem:[%s349 + $0x80] sm:$0xff]
        %v982 = vld [vmem:[%s349 + $0x88] sm:$0xff]
        %v983 = vld [vmem:[%s349 + $0x90] sm:$0xff]
        %v984 = vld [vmem:[%s349 + $0x98] sm:$0xff]
        %v985 = vld [vmem:[%s349 + $0xa0] sm:$0xff]
        %v986 = vld [vmem:[%s349 + $0xa8] sm:$0xff]
        %v987 = vld [vmem:[%s349 + $0xb0] sm:$0xff]
        %v988 = vld [vmem:[%s349 + $0xb8] sm:$0xff]
        %v989 = vld [vmem:[%s349 + $0xc0] sm:$0xff]
        %v990 = vld [vmem:[%s349 + $0xc8] sm:$0xff]
        %v991 = vld [vmem:[%s349 + $0xd0] sm:$0xff]
        %v992 = vld [vmem:[%s349 + $0xd8] sm:$0xff]
        %v993 = vld [vmem:[%s349 + $0xe0] sm:$0xff]
        %v994 = vld [vmem:[%s349 + $0xe8] sm:$0xff]
        %v995 = vld [vmem:[%s349 + $0xf0] sm:$0xff]
        %v996 = vld [vmem:[%s349 + $0xf8] sm:$0xff]
        %v998 = vlaneseq
        %v999 = vshrl.u32 %v998, 7
        %v1000 = vsub.s32 0, %v999
        %v1001 = vrot.slane %v964, %v1000
        %v1003 = vadd.f32 %v1001, %v965
        %v1004 = vadd.f32 %v1001, %v966
        %v1005 = vadd.f32 %v1001, %v967
        %v1006 = vadd.f32 %v1001, %v968
        %v1007 = vadd.f32 %v1001, %v969
        %v1008 = vadd.f32 %v1001, %v970
        %v1009 = vadd.f32 %v1001, %v971
        %v1010 = vadd.f32 %v1001, %v972
        %v1011 = vadd.f32 %v1001, %v973
        %v1012 = vadd.f32 %v1001, %v974
        %v1013 = vadd.f32 %v1001, %v975
        %v1014 = vadd.f32 %v1001, %v976
        %v1015 = vadd.f32 %v1001, %v977
        %v1016 = vadd.f32 %v1001, %v978
        %v1017 = vadd.f32 %v1001, %v979
        %v1018 = vadd.f32 %v1001, %v980
        %v1019 = vadd.f32 %v1001, %v981
        %v1020 = vadd.f32 %v1001, %v982
        %v1021 = vadd.f32 %v1001, %v983
        %v1022 = vadd.f32 %v1001, %v984
        %v1023 = vadd.f32 %v1001, %v985
        %v1024 = vadd.f32 %v1001, %v986
        %v1025 = vadd.f32 %v1001, %v987
        %v1026 = vadd.f32 %v1001, %v988
        %v1027 = vadd.f32 %v1001, %v989
        %v1028 = vadd.f32 %v1001, %v990
        %v1029 = vadd.f32 %v1001, %v991
        %v1030 = vadd.f32 %v1001, %v992
        %v1031 = vadd.f32 %v1001, %v993
        %v1032 = vadd.f32 %v1001, %v994
        %v1033 = vadd.f32 %v1001, %v995
        %v1034 = vadd.f32 %v1001, %v996
        %v1035 = vrcp.pop %v1003
        %v1036 = vrcp.pop %v1004
        %v1037 = vrcp.pop %v1005
        %v1038 = vrcp.pop %v1006
        %v1039 = vrcp.pop %v1007
        %v1040 = vrcp.pop %v1008
        %v1041 = vrcp.pop %v1009
        %v1042 = vrcp.pop %v1010
        %v1043 = vrcp.pop %v1011
        %v1044 = vrcp.pop %v1012
        %v1045 = vrcp.pop %v1013
        %v1046 = vrcp.pop %v1014
        %v1047 = vrcp.pop %v1015
        %v1048 = vrcp.pop %v1016
        %v1049 = vrcp.pop %v1017
        %v1050 = vrcp.pop %v1018
        %v1051 = vrcp.pop %v1019
        %v1052 = vrcp.pop %v1020
        %v1053 = vrcp.pop %v1021
        %v1054 = vrcp.pop %v1022
        %v1055 = vrcp.pop %v1023
        %v1056 = vrcp.pop %v1024
        %v1057 = vrcp.pop %v1025
        %v1058 = vrcp.pop %v1026
        %v1059 = vrcp.pop %v1027
        %v1060 = vrcp.pop %v1028
        %v1061 = vrcp.pop %v1029
        %v1062 = vrcp.pop %v1030
        %v1063 = vrcp.pop %v1031
        %v1064 = vrcp.pop %v1032
        %v1065 = vrcp.pop %v1033
        %v1066 = vrcp.pop %v1034
        %v1067 = vmul.f32 %v1001, %v1035
        %v1068 = vmul.f32 %v1001, %v1036
        %v1069 = vmul.f32 %v1001, %v1037
        %v1070 = vmul.f32 %v1001, %v1038
        %v1071 = vmul.f32 %v1001, %v1039
        %v1072 = vmul.f32 %v1001, %v1040
        %v1073 = vmul.f32 %v1001, %v1041
        %v1074 = vmul.f32 %v1001, %v1042
        %v1075 = vmul.f32 %v1001, %v1043
        %v1076 = vmul.f32 %v1001, %v1044
        %v1077 = vmul.f32 %v1001, %v1045
        %v1078 = vmul.f32 %v1001, %v1046
        %v1079 = vmul.f32 %v1001, %v1047
        %v1080 = vmul.f32 %v1001, %v1048
        %v1081 = vmul.f32 %v1001, %v1049
        %v1082 = vmul.f32 %v1001, %v1050
        %v1083 = vmul.f32 %v1001, %v1051
        %v1084 = vmul.f32 %v1001, %v1052
        %v1085 = vmul.f32 %v1001, %v1053
        %v1086 = vmul.f32 %v1001, %v1054
        %v1087 = vmul.f32 %v1001, %v1055
        %v1088 = vmul.f32 %v1001, %v1056
        %v1089 = vmul.f32 %v1001, %v1057
        %v1090 = vmul.f32 %v1001, %v1058
        %v1091 = vmul.f32 %v1001, %v1059
        %v1092 = vmul.f32 %v1001, %v1060
        %v1093 = vmul.f32 %v1001, %v1061
        %v1094 = vmul.f32 %v1001, %v1062
        %v1095 = vmul.f32 %v1001, %v1063
        %v1096 = vmul.f32 %v1001, %v1064
        %v1097 = vmul.f32 %v1001, %v1065
        %v1098 = vmul.f32 %v1001, %v1066
        %v1099 = vmul.f32 %v1067, %v932
        %v1100 = vmul.f32 %v1068, %v933
        %v1101 = vmul.f32 %v1069, %v934
        %v1102 = vmul.f32 %v1070, %v935
        %v1103 = vmul.f32 %v1071, %v936
        %v1104 = vmul.f32 %v1072, %v937
        %v1105 = vmul.f32 %v1073, %v938
        %v1106 = vmul.f32 %v1074, %v939
        %v1107 = vmul.f32 %v1075, %v940
        %v1108 = vmul.f32 %v1076, %v941
        %v1109 = vmul.f32 %v1077, %v942
        %v1110 = vmul.f32 %v1078, %v943
        %v1111 = vmul.f32 %v1079, %v944
        %v1112 = vmul.f32 %v1080, %v945
        %v1113 = vmul.f32 %v1081, %v946
        %v1114 = vmul.f32 %v1082, %v947
        %v1115 = vmul.f32 %v1083, %v948
        %v1116 = vmul.f32 %v1084, %v949
        %v1117 = vmul.f32 %v1085, %v950
        %v1118 = vmul.f32 %v1086, %v951
        %v1119 = vmul.f32 %v1087, %v952
        %v1120 = vmul.f32 %v1088, %v953
        %v1121 = vmul.f32 %v1089, %v954
        %v1122 = vmul.f32 %v1090, %v955
        %v1123 = vmul.f32 %v1091, %v956
        %v1124 = vmul.f32 %v1092, %v957
        %v1125 = vmul.f32 %v1093, %v958
        %v1126 = vmul.f32 %v1094, %v959
        %v1127 = vmul.f32 %v1095, %v960
        %v1128 = vmul.f32 %v1096, %v961
        %v1129 = vmul.f32 %v1097, %v962
        %v1130 = vmul.f32 %v1098, %v963
        %v1131 = vpack.c.bf16 %v1100, %v1099
        %v1132 = vpack.c.bf16 %v1102, %v1101
        %v1133 = vpack.c.bf16 %v1104, %v1103
        %v1134 = vpack.c.bf16 %v1106, %v1105
        %v1135 = vpack.c.bf16 %v1108, %v1107
        %v1136 = vpack.c.bf16 %v1110, %v1109
        %v1137 = vpack.c.bf16 %v1112, %v1111
        %v1138 = vpack.c.bf16 %v1114, %v1113
        %v1139 = vpack.c.bf16 %v1116, %v1115
        %v1140 = vpack.c.bf16 %v1118, %v1117
        %v1141 = vpack.c.bf16 %v1120, %v1119
        %v1142 = vpack.c.bf16 %v1122, %v1121
        %v1143 = vpack.c.bf16 %v1124, %v1123
        %v1144 = vpack.c.bf16 %v1126, %v1125
        %v1145 = vpack.c.bf16 %v1128, %v1127
        %v1146 = vpack.c.bf16 %v1130, %v1129
        %v1147 = vld [vmem:[#allocation10] sm:$0xff]
        %v1148 = vld [vmem:[#allocation10 + $0x8] sm:$0xff]
        %v1149 = vld [vmem:[#allocation10 + $0x10] sm:$0xff]
        %v1150 = vld [vmem:[#allocation10 + $0x18] sm:$0xff]
        %v1151 = vld [vmem:[#allocation10 + $0x20] sm:$0xff]
        %v1152 = vld [vmem:[#allocation10 + $0x28] sm:$0xff]
        %v1153 = vld [vmem:[#allocation10 + $0x30] sm:$0xff]
        %v1154 = vld [vmem:[#allocation10 + $0x38] sm:$0xff]
        %v1155 = vld [vmem:[#allocation10 + $0x40] sm:$0xff]
        %v1156 = vld [vmem:[#allocation10 + $0x48] sm:$0xff]
        %v1157 = vld [vmem:[#allocation10 + $0x50] sm:$0xff]
        %v1158 = vld [vmem:[#allocation10 + $0x58] sm:$0xff]
        %v1159 = vld [vmem:[#allocation10 + $0x60] sm:$0xff]
        %v1160 = vld [vmem:[#allocation10 + $0x68] sm:$0xff]
        %v1161 = vld [vmem:[#allocation10 + $0x70] sm:$0xff]
        %v1162 = vld [vmem:[#allocation10 + $0x78] sm:$0xff]
        %v1179 = vunpack.c.l.b16 %v1147
        %v1180 = vunpack.c.h.b16 %v1147
        %v1181 = vunpack.c.l.b16 %v1148
        %v1182 = vunpack.c.h.b16 %v1148
        %v1183 = vunpack.c.l.b16 %v1149
        %v1184 = vunpack.c.h.b16 %v1149
        %v1185 = vunpack.c.l.b16 %v1150
        %v1186 = vunpack.c.h.b16 %v1150
        %v1187 = vunpack.c.l.b16 %v1151
        %v1188 = vunpack.c.h.b16 %v1151
        %v1189 = vunpack.c.l.b16 %v1152
        %v1190 = vunpack.c.h.b16 %v1152
        %v1191 = vunpack.c.l.b16 %v1153
        %v1192 = vunpack.c.h.b16 %v1153
        %v1193 = vunpack.c.l.b16 %v1154
        %v1194 = vunpack.c.h.b16 %v1154
        %v1195 = vunpack.c.l.b16 %v1155
        %v1196 = vunpack.c.h.b16 %v1155
        %v1197 = vunpack.c.l.b16 %v1156
        %v1198 = vunpack.c.h.b16 %v1156
        %v1199 = vunpack.c.l.b16 %v1157
        %v1200 = vunpack.c.h.b16 %v1157
        %v1201 = vunpack.c.l.b16 %v1158
        %v1202 = vunpack.c.h.b16 %v1158
        %v1203 = vunpack.c.l.b16 %v1159
        %v1204 = vunpack.c.h.b16 %v1159
        %v1205 = vunpack.c.l.b16 %v1160
        %v1206 = vunpack.c.h.b16 %v1160
        %v1207 = vunpack.c.l.b16 %v1161
        %v1208 = vunpack.c.h.b16 %v1161
        %v1209 = vunpack.c.l.b16 %v1162
        %v1210 = vunpack.c.h.b16 %v1162
        %v1211 = vpack.c.b16 %v1181, %v1179
        %v1212 = vpack.c.b16 %v1182, %v1180
        %v1213 = vpack.c.b16 %v1185, %v1183
        %v1214 = vpack.c.b16 %v1186, %v1184
        %v1215 = vpack.c.b16 %v1189, %v1187
        %v1216 = vpack.c.b16 %v1190, %v1188
        %v1217 = vpack.c.b16 %v1193, %v1191
        %v1218 = vpack.c.b16 %v1194, %v1192
        %v1219 = vpack.c.b16 %v1197, %v1195
        %v1220 = vpack.c.b16 %v1198, %v1196
        %v1221 = vpack.c.b16 %v1201, %v1199
        %v1222 = vpack.c.b16 %v1202, %v1200
        %v1223 = vpack.c.b16 %v1205, %v1203
        %v1224 = vpack.c.b16 %v1206, %v1204
        %v1225 = vpack.c.b16 %v1209, %v1207
        %v1226 = vpack.c.b16 %v1210, %v1208
        %1243 = vmatprep.subr.bf16.mxu0 %v1212
        %1244 = vmatpush1.bf16.msra.mxu0 %v1211
        %1245 = vmatprep.subr.bf16.mxu0 %v1214
        %1246 = vmatpush1.bf16.msra.mxu0 %v1213
        %1247 = vmatprep.subr.bf16.mxu0 %v1216
        %1248 = vmatpush1.bf16.msra.mxu0 %v1215
        %1249 = vmatprep.subr.bf16.mxu0 %v1218
        %1250 = vmatpush1.bf16.msra.mxu0 %v1217
        %1251 = vmatprep.subr.bf16.mxu0 %v1220
        %1252 = vmatpush1.bf16.msra.mxu0 %v1219
        %1253 = vmatprep.subr.bf16.mxu0 %v1222
        %1254 = vmatpush1.bf16.msra.mxu0 %v1221
        %1255 = vmatprep.subr.bf16.mxu0 %v1224
        %1256 = vmatpush1.bf16.msra.mxu0 %v1223
        %1257 = vmatprep.subr.bf16.mxu0 %v1226
        %1258 = vmatpush1.bf16.msra.mxu0 %v1225
        %1259 = vmatprep.subr.bf16.mxu0 0
        %1260 = vmatpush1.bf16.msra.mxu0 0
        %1261 = vmatprep.subr.bf16.mxu0 0
        %1262 = vmatpush1.bf16.msra.mxu0 0
        %1263 = vmatprep.subr.bf16.mxu0 0
        %1264 = vmatpush1.bf16.msra.mxu0 0
        %1265 = vmatprep.subr.bf16.mxu0 0
        %1266 = vmatpush1.bf16.msra.mxu0 0
        %1267 = vmatprep.subr.bf16.mxu0 0
        %1268 = vmatpush1.bf16.msra.mxu0 0
        %1269 = vmatprep.subr.bf16.mxu0 0
        %1270 = vmatpush1.bf16.msra.mxu0 0
        %1271 = vmatprep.subr.bf16.mxu0 0
        %1272 = vmatpush1.bf16.msra.mxu0 0
        %1273 = vmatprep.subr.bf16.mxu0 0
        %1274 = vmatpush1.bf16.msra.mxu0 0
        %1275 = vmatprep.mubr.bf16.mxu0 0
        %1276 = vmatmul.mubr.bf16.gmra.mrb[0].mxu0 %v1131
        %v1277 = vpop.f32.mrb[0].mxu0
        %v1278 = vadd.f32 0.0, %v1277
        %v1279 = vpop.f32.mrb[0].mxu0
        %v1280 = vadd.f32 0.0, %v1279
        %v1281 = vpop.f32.mrb[0].mxu0
        %v1282 = vadd.f32 0.0, %v1281
        %v1283 = vpop.f32.mrb[0].mxu0
        %v1284 = vadd.f32 0.0, %v1283
        %1285 = vmatprep.mubr.bf16.mxu0 0
        %1286 = vmatmul.mubr.bf16.gmra.mrb[0].mxu0 %v1132
        %v1287 = vpop.f32.mrb[0].mxu0
        %v1288 = vadd.f32 0.0, %v1287
        %v1289 = vpop.f32.mrb[0].mxu0
        %v1290 = vadd.f32 0.0, %v1289
        %v1291 = vpop.f32.mrb[0].mxu0
        %v1292 = vadd.f32 0.0, %v1291
        %v1293 = vpop.f32.mrb[0].mxu0
        %v1294 = vadd.f32 0.0, %v1293
        %1295 = vmatprep.mubr.bf16.mxu0 0
        %1296 = vmatmul.mubr.bf16.gmra.mrb[0].mxu0 %v1133
        %v1297 = vpop.f32.mrb[0].mxu0
        %v1298 = vadd.f32 0.0, %v1297
        %v1299 = vpop.f32.mrb[0].mxu0
        %v1300 = vadd.f32 0.0, %v1299
        %v1301 = vpop.f32.mrb[0].mxu0
        %v1302 = vadd.f32 0.0, %v1301
        %v1303 = vpop.f32.mrb[0].mxu0
        %v1304 = vadd.f32 0.0, %v1303
        %1305 = vmatprep.mubr.bf16.mxu0 0
        %1306 = vmatmul.mubr.bf16.gmra.mrb[0].mxu0 %v1134
        %v1307 = vpop.f32.mrb[0].mxu0
        %v1308 = vadd.f32 0.0, %v1307
        %v1309 = vpop.f32.mrb[0].mxu0
        %v1310 = vadd.f32 0.0, %v1309
        %v1311 = vpop.f32.mrb[0].mxu0
        %v1312 = vadd.f32 0.0, %v1311
        %v1313 = vpop.f32.mrb[0].mxu0
        %v1314 = vadd.f32 0.0, %v1313
        %1315 = vmatprep.mubr.bf16.mxu0 0
        %1316 = vmatmul.mubr.bf16.gmra.mrb[0].mxu0 %v1135
        %v1317 = vpop.f32.mrb[0].mxu0
        %v1318 = vadd.f32 0.0, %v1317
        %v1319 = vpop.f32.mrb[0].mxu0
        %v1320 = vadd.f32 0.0, %v1319
        %v1321 = vpop.f32.mrb[0].mxu0
        %v1322 = vadd.f32 0.0, %v1321
        %v1323 = vpop.f32.mrb[0].mxu0
        %v1324 = vadd.f32 0.0, %v1323
        %1325 = vmatprep.mubr.bf16.mxu0 0
        %1326 = vmatmul.mubr.bf16.gmra.mrb[0].mxu0 %v1136
        %v1327 = vpop.f32.mrb[0].mxu0
        %v1328 = vadd.f32 0.0, %v1327
        %v1329 = vpop.f32.mrb[0].mxu0
        %v1330 = vadd.f32 0.0, %v1329
        %v1331 = vpop.f32.mrb[0].mxu0
        %v1332 = vadd.f32 0.0, %v1331
        %v1333 = vpop.f32.mrb[0].mxu0
        %v1334 = vadd.f32 0.0, %v1333
        %1335 = vmatprep.mubr.bf16.mxu0 0
        %1336 = vmatmul.mubr.bf16.gmra.mrb[0].mxu0 %v1137
        %v1337 = vpop.f32.mrb[0].mxu0
        %v1338 = vadd.f32 0.0, %v1337
        %v1339 = vpop.f32.mrb[0].mxu0
        %v1340 = vadd.f32 0.0, %v1339
        %v1341 = vpop.f32.mrb[0].mxu0
        %v1342 = vadd.f32 0.0, %v1341
        %v1343 = vpop.f32.mrb[0].mxu0
        %v1344 = vadd.f32 0.0, %v1343
        %1345 = vmatprep.mubr.bf16.mxu0 0
        %1346 = vmatmul.mubr.bf16.gmra.mrb[0].mxu0 %v1138
        %v1347 = vpop.f32.mrb[0].mxu0
        %v1348 = vadd.f32 0.0, %v1347
        %v1349 = vpop.f32.mrb[0].mxu0
        %v1350 = vadd.f32 0.0, %v1349
        %v1351 = vpop.f32.mrb[0].mxu0
        %v1352 = vadd.f32 0.0, %v1351
        %v1353 = vpop.f32.mrb[0].mxu0
        %v1354 = vadd.f32 0.0, %v1353
        %1355 = vmatprep.mubr.bf16.mxu0 0
        %1356 = vmatmul.mubr.bf16.gmra.mrb[0].mxu0 %v1139
        %v1357 = vpop.f32.mrb[0].mxu0
        %v1358 = vadd.f32 0.0, %v1357
        %v1359 = vpop.f32.mrb[0].mxu0
        %v1360 = vadd.f32 0.0, %v1359
        %v1361 = vpop.f32.mrb[0].mxu0
        %v1362 = vadd.f32 0.0, %v1361
        %v1363 = vpop.f32.mrb[0].mxu0
        %v1364 = vadd.f32 0.0, %v1363
        %1365 = vmatprep.mubr.bf16.mxu0 0
        %1366 = vmatmul.mubr.bf16.gmra.mrb[0].mxu0 %v1140
        %v1367 = vpop.f32.mrb[0].mxu0
        %v1368 = vadd.f32 0.0, %v1367
        %v1369 = vpop.f32.mrb[0].mxu0
        %v1370 = vadd.f32 0.0, %v1369
        %v1371 = vpop.f32.mrb[0].mxu0
        %v1372 = vadd.f32 0.0, %v1371
        %v1373 = vpop.f32.mrb[0].mxu0
        %v1374 = vadd.f32 0.0, %v1373
        %1375 = vmatprep.mubr.bf16.mxu0 0
        %1376 = vmatmul.mubr.bf16.gmra.mrb[0].mxu0 %v1141
        %v1377 = vpop.f32.mrb[0].mxu0
        %v1378 = vadd.f32 0.0, %v1377
        %v1379 = vpop.f32.mrb[0].mxu0
        %v1380 = vadd.f32 0.0, %v1379
        %v1381 = vpop.f32.mrb[0].mxu0
        %v1382 = vadd.f32 0.0, %v1381
        %v1383 = vpop.f32.mrb[0].mxu0
        %v1384 = vadd.f32 0.0, %v1383
        %1385 = vmatprep.mubr.bf16.mxu0 0
        %1386 = vmatmul.mubr.bf16.gmra.mrb[0].mxu0 %v1142
        %v1387 = vpop.f32.mrb[0].mxu0
        %v1388 = vadd.f32 0.0, %v1387
        %v1389 = vpop.f32.mrb[0].mxu0
        %v1390 = vadd.f32 0.0, %v1389
        %v1391 = vpop.f32.mrb[0].mxu0
        %v1392 = vadd.f32 0.0, %v1391
        %v1393 = vpop.f32.mrb[0].mxu0
        %v1394 = vadd.f32 0.0, %v1393
        %1395 = vmatprep.mubr.bf16.mxu0 0
        %1396 = vmatmul.mubr.bf16.gmra.mrb[0].mxu0 %v1143
        %v1397 = vpop.f32.mrb[0].mxu0
        %v1398 = vadd.f32 0.0, %v1397
        %v1399 = vpop.f32.mrb[0].mxu0
        %v1400 = vadd.f32 0.0, %v1399
        %v1401 = vpop.f32.mrb[0].mxu0
        %v1402 = vadd.f32 0.0, %v1401
        %v1403 = vpop.f32.mrb[0].mxu0
        %v1404 = vadd.f32 0.0, %v1403
        %1405 = vmatprep.mubr.bf16.mxu0 0
        %1406 = vmatmul.mubr.bf16.gmra.mrb[0].mxu0 %v1144
        %v1407 = vpop.f32.mrb[0].mxu0
        %v1408 = vadd.f32 0.0, %v1407
        %v1409 = vpop.f32.mrb[0].mxu0
        %v1410 = vadd.f32 0.0, %v1409
        %v1411 = vpop.f32.mrb[0].mxu0
        %v1412 = vadd.f32 0.0, %v1411
        %v1413 = vpop.f32.mrb[0].mxu0
        %v1414 = vadd.f32 0.0, %v1413
        %1415 = vmatprep.mubr.bf16.mxu0 0
        %1416 = vmatmul.mubr.bf16.gmra.mrb[0].mxu0 %v1145
        %v1417 = vpop.f32.mrb[0].mxu0
        %v1418 = vadd.f32 0.0, %v1417
        %v1419 = vpop.f32.mrb[0].mxu0
        %v1420 = vadd.f32 0.0, %v1419
        %v1421 = vpop.f32.mrb[0].mxu0
        %v1422 = vadd.f32 0.0, %v1421
        %v1423 = vpop.f32.mrb[0].mxu0
        %v1424 = vadd.f32 0.0, %v1423
        %1425 = vmatprep.mubr.bf16.mxu0 0
        %1426 = vmatmul.mubr.bf16.gmra.mrb[0].mxu0 %v1146
        %v1427 = vpop.f32.mrb[0].mxu0
        %v1428 = vadd.f32 0.0, %v1427
        %v1429 = vpop.f32.mrb[0].mxu0
        %v1430 = vadd.f32 0.0, %v1429
        %v1431 = vpop.f32.mrb[0].mxu0
        %v1432 = vadd.f32 0.0, %v1431
        %v1433 = vpop.f32.mrb[0].mxu0
        %v1434 = vadd.f32 0.0, %v1433
        %1435 = vdwg.mxu0
        %v1436 = vunpack.c.l.bf16 %v419
        %v1437 = vunpack.c.h.bf16 %v419
        %v1438 = vunpack.c.l.bf16 %v420
        %v1439 = vunpack.c.h.bf16 %v420
        %v1440 = vunpack.c.l.bf16 %v421
        %v1441 = vunpack.c.h.bf16 %v421
        %v1442 = vunpack.c.l.bf16 %v422
        %v1443 = vunpack.c.h.bf16 %v422
        %v1444 = vunpack.c.l.bf16 %v423
        %v1445 = vunpack.c.h.bf16 %v423
        %v1446 = vunpack.c.l.bf16 %v424
        %v1447 = vunpack.c.h.bf16 %v424
        %v1448 = vunpack.c.l.bf16 %v425
        %v1449 = vunpack.c.h.bf16 %v425
        %v1450 = vunpack.c.l.bf16 %v426
        %v1451 = vunpack.c.h.bf16 %v426
        %v1452 = vunpack.c.l.bf16 %v427
        %v1453 = vunpack.c.h.bf16 %v427
        %v1454 = vunpack.c.l.bf16 %v428
        %v1455 = vunpack.c.h.bf16 %v428
        %v1456 = vunpack.c.l.bf16 %v429
        %v1457 = vunpack.c.h.bf16 %v429
        %v1458 = vunpack.c.l.bf16 %v430
        %v1459 = vunpack.c.h.bf16 %v430
        %v1460 = vunpack.c.l.bf16 %v431
        %v1461 = vunpack.c.h.bf16 %v431
        %v1462 = vunpack.c.l.bf16 %v432
        %v1463 = vunpack.c.h.bf16 %v432
        %v1464 = vunpack.c.l.bf16 %v433
        %v1465 = vunpack.c.h.bf16 %v433
        %v1466 = vunpack.c.l.bf16 %v434
        %v1467 = vunpack.c.h.bf16 %v434
        %v1468 = vunpack.c.l.bf16 %v435
        %v1469 = vunpack.c.h.bf16 %v435
        %v1470 = vunpack.c.l.bf16 %v436
        %v1471 = vunpack.c.h.bf16 %v436
        %v1472 = vunpack.c.l.bf16 %v437
        %v1473 = vunpack.c.h.bf16 %v437
        %v1474 = vunpack.c.l.bf16 %v438
        %v1475 = vunpack.c.h.bf16 %v438
        %v1476 = vunpack.c.l.bf16 %v439
        %v1477 = vunpack.c.h.bf16 %v439
        %v1478 = vunpack.c.l.bf16 %v440
        %v1479 = vunpack.c.h.bf16 %v440
        %v1480 = vunpack.c.l.bf16 %v441
        %v1481 = vunpack.c.h.bf16 %v441
        %v1482 = vunpack.c.l.bf16 %v442
        %v1483 = vunpack.c.h.bf16 %v442
        %v1484 = vunpack.c.l.bf16 %v443
        %v1485 = vunpack.c.h.bf16 %v443
        %v1486 = vunpack.c.l.bf16 %v444
        %v1487 = vunpack.c.h.bf16 %v444
        %v1488 = vunpack.c.l.bf16 %v445
        %v1489 = vunpack.c.h.bf16 %v445
        %v1490 = vunpack.c.l.bf16 %v446
        %v1491 = vunpack.c.h.bf16 %v446
        %v1492 = vunpack.c.l.bf16 %v447
        %v1493 = vunpack.c.h.bf16 %v447
        %v1494 = vunpack.c.l.bf16 %v448
        %v1495 = vunpack.c.h.bf16 %v448
        %v1496 = vunpack.c.l.bf16 %v449
        %v1497 = vunpack.c.h.bf16 %v449
        %v1498 = vunpack.c.l.bf16 %v450
        %v1499 = vunpack.c.h.bf16 %v450
        %v1500 = vadd.f32 %v1436, %v1278
        %v1501 = vadd.f32 %v1437, %v1280
        %v1502 = vadd.f32 %v1438, %v1282
        %v1503 = vadd.f32 %v1439, %v1284
        %v1504 = vadd.f32 %v1440, %v1288
        %v1505 = vadd.f32 %v1441, %v1290
        %v1506 = vadd.f32 %v1442, %v1292
        %v1507 = vadd.f32 %v1443, %v1294
        %v1508 = vadd.f32 %v1444, %v1298
        %v1509 = vadd.f32 %v1445, %v1300
        %v1510 = vadd.f32 %v1446, %v1302
        %v1511 = vadd.f32 %v1447, %v1304
        %v1512 = vadd.f32 %v1448, %v1308
        %v1513 = vadd.f32 %v1449, %v1310
        %v1514 = vadd.f32 %v1450, %v1312
        %v1515 = vadd.f32 %v1451, %v1314
        %v1516 = vadd.f32 %v1452, %v1318
        %v1517 = vadd.f32 %v1453, %v1320
        %v1518 = vadd.f32 %v1454, %v1322
        %v1519 = vadd.f32 %v1455, %v1324
        %v1520 = vadd.f32 %v1456, %v1328
        %v1521 = vadd.f32 %v1457, %v1330
        %v1522 = vadd.f32 %v1458, %v1332
        %v1523 = vadd.f32 %v1459, %v1334
        %v1524 = vadd.f32 %v1460, %v1338
        %v1525 = vadd.f32 %v1461, %v1340
        %v1526 = vadd.f32 %v1462, %v1342
        %v1527 = vadd.f32 %v1463, %v1344
        %v1528 = vadd.f32 %v1464, %v1348
        %v1529 = vadd.f32 %v1465, %v1350
        %v1530 = vadd.f32 %v1466, %v1352
        %v1531 = vadd.f32 %v1467, %v1354
        %v1532 = vadd.f32 %v1468, %v1358
        %v1533 = vadd.f32 %v1469, %v1360
        %v1534 = vadd.f32 %v1470, %v1362
        %v1535 = vadd.f32 %v1471, %v1364
        %v1536 = vadd.f32 %v1472, %v1368
        %v1537 = vadd.f32 %v1473, %v1370
        %v1538 = vadd.f32 %v1474, %v1372
        %v1539 = vadd.f32 %v1475, %v1374
        %v1540 = vadd.f32 %v1476, %v1378
        %v1541 = vadd.f32 %v1477, %v1380
        %v1542 = vadd.f32 %v1478, %v1382
        %v1543 = vadd.f32 %v1479, %v1384
        %v1544 = vadd.f32 %v1480, %v1388
        %v1545 = vadd.f32 %v1481, %v1390
        %v1546 = vadd.f32 %v1482, %v1392
        %v1547 = vadd.f32 %v1483, %v1394
        %v1548 = vadd.f32 %v1484, %v1398
        %v1549 = vadd.f32 %v1485, %v1400
        %v1550 = vadd.f32 %v1486, %v1402
        %v1551 = vadd.f32 %v1487, %v1404
        %v1552 = vadd.f32 %v1488, %v1408
        %v1553 = vadd.f32 %v1489, %v1410
        %v1554 = vadd.f32 %v1490, %v1412
        %v1555 = vadd.f32 %v1491, %v1414
        %v1556 = vadd.f32 %v1492, %v1418
        %v1557 = vadd.f32 %v1493, %v1420
        %v1558 = vadd.f32 %v1494, %v1422
        %v1559 = vadd.f32 %v1495, %v1424
        %v1560 = vadd.f32 %v1496, %v1428
        %v1561 = vadd.f32 %v1497, %v1430
        %v1562 = vadd.f32 %v1498, %v1432
        %v1563 = vadd.f32 %v1499, %v1434
        %1564 = vst [vmem:[%s395] sm:$0xff] %v1500
        %1565 = vst [vmem:[%s395 + $0x8] sm:$0xff] %v1501
        %1566 = vst [vmem:[%s395 + $0x10] sm:$0xff] %v1502
        %1567 = vst [vmem:[%s395 + $0x18] sm:$0xff] %v1503
        %1568 = vst [vmem:[%s395 + $0x20] sm:$0xff] %v1504
        %1569 = vst [vmem:[%s395 + $0x28] sm:$0xff] %v1505
        %1570 = vst [vmem:[%s395 + $0x30] sm:$0xff] %v1506
        %1571 = vst [vmem:[%s395 + $0x38] sm:$0xff] %v1507
        %1572 = vst [vmem:[%s395 + $0x40] sm:$0xff] %v1508
        %1573 = vst [vmem:[%s395 + $0x48] sm:$0xff] %v1509
        %1574 = vst [vmem:[%s395 + $0x50] sm:$0xff] %v1510
        %1575 = vst [vmem:[%s395 + $0x58] sm:$0xff] %v1511
        %1576 = vst [vmem:[%s395 + $0x60] sm:$0xff] %v1512
        %1577 = vst [vmem:[%s395 + $0x68] sm:$0xff] %v1513
        %1578 = vst [vmem:[%s395 + $0x70] sm:$0xff] %v1514
        %1579 = vst [vmem:[%s395 + $0x78] sm:$0xff] %v1515
        %1580 = vst [vmem:[%s395 + $0x80] sm:$0xff] %v1516
        %1581 = vst [vmem:[%s395 + $0x88] sm:$0xff] %v1517
        %1582 = vst [vmem:[%s395 + $0x90] sm:$0xff] %v1518
        %1583 = vst [vmem:[%s395 + $0x98] sm:$0xff] %v1519
        %1584 = vst [vmem:[%s395 + $0xa0] sm:$0xff] %v1520
        %1585 = vst [vmem:[%s395 + $0xa8] sm:$0xff] %v1521
        %1586 = vst [vmem:[%s395 + $0xb0] sm:$0xff] %v1522
        %1587 = vst [vmem:[%s395 + $0xb8] sm:$0xff] %v1523
        %1588 = vst [vmem:[%s395 + $0xc0] sm:$0xff] %v1524
        %1589 = vst [vmem:[%s395 + $0xc8] sm:$0xff] %v1525
        %1590 = vst [vmem:[%s395 + $0xd0] sm:$0xff] %v1526
        %1591 = vst [vmem:[%s395 + $0xd8] sm:$0xff] %v1527
        %1592 = vst [vmem:[%s395 + $0xe0] sm:$0xff] %v1528
        %1593 = vst [vmem:[%s395 + $0xe8] sm:$0xff] %v1529
        %1594 = vst [vmem:[%s395 + $0xf0] sm:$0xff] %v1530
        %1595 = vst [vmem:[%s395 + $0xf8] sm:$0xff] %v1531
        %1596 = vst [vmem:[%s395 + $0x100] sm:$0xff] %v1532
        %1597 = vst [vmem:[%s395 + $0x108] sm:$0xff] %v1533
        %1598 = vst [vmem:[%s395 + $0x110] sm:$0xff] %v1534
        %1599 = vst [vmem:[%s395 + $0x118] sm:$0xff] %v1535
        %1600 = vst [vmem:[%s395 + $0x120] sm:$0xff] %v1536
        %1601 = vst [vmem:[%s395 + $0x128] sm:$0xff] %v1537
        %1602 = vst [vmem:[%s395 + $0x130] sm:$0xff] %v1538
        %1603 = vst [vmem:[%s395 + $0x138] sm:$0xff] %v1539
        %1604 = vst [vmem:[%s395 + $0x140] sm:$0xff] %v1540
        %1605 = vst [vmem:[%s395 + $0x148] sm:$0xff] %v1541
        %1606 = vst [vmem:[%s395 + $0x150] sm:$0xff] %v1542
        %1607 = vst [vmem:[%s395 + $0x158] sm:$0xff] %v1543
        %1608 = vst [vmem:[%s395 + $0x160] sm:$0xff] %v1544
        %1609 = vst [vmem:[%s395 + $0x168] sm:$0xff] %v1545
        %1610 = vst [vmem:[%s395 + $0x170] sm:$0xff] %v1546
        %1611 = vst [vmem:[%s395 + $0x178] sm:$0xff] %v1547
        %1612 = vst [vmem:[%s395 + $0x180] sm:$0xff] %v1548
        %1613 = vst [vmem:[%s395 + $0x188] sm:$0xff] %v1549
        %1614 = vst [vmem:[%s395 + $0x190] sm:$0xff] %v1550
        %1615 = vst [vmem:[%s395 + $0x198] sm:$0xff] %v1551
        %1616 = vst [vmem:[%s395 + $0x1a0] sm:$0xff] %v1552
        %1617 = vst [vmem:[%s395 + $0x1a8] sm:$0xff] %v1553
        %1618 = vst [vmem:[%s395 + $0x1b0] sm:$0xff] %v1554
        %1619 = vst [vmem:[%s395 + $0x1b8] sm:$0xff] %v1555
        %1620 = vst [vmem:[%s395 + $0x1c0] sm:$0xff] %v1556
        %1621 = vst [vmem:[%s395 + $0x1c8] sm:$0xff] %v1557
        %1622 = vst [vmem:[%s395 + $0x1d0] sm:$0xff] %v1558
        %1623 = vst [vmem:[%s395 + $0x1d8] sm:$0xff] %v1559
        %1624 = vst [vmem:[%s395 + $0x1e0] sm:$0xff] %v1560
        %1625 = vst [vmem:[%s395 + $0x1e8] sm:$0xff] %v1561
        %1626 = vst [vmem:[%s395 + $0x1f0] sm:$0xff] %v1562
        %1627 = vst [vmem:[%s395 + $0x1f8] sm:$0xff] %v1563
        %s1628 = sand.u32 %s176, 1
        %s1629 = scalar_lea.sflag [#allocation4], %s1628
        %s1630 = sand.u32 %s176, 1
        %s1631 = smul.addr %s1630, 512
        %s1632 = scalar_lea.vmem [#allocation11], %s1631
        // Predicated region
        $region65: #{tpu_custom_call.1} parent=43 // pred_check
          %p1633 = pneg %p186
        $region66: #{tpu_custom_call.1} parent=43 // pred_check_branch
          %1635 = sbr.rel (%p1633) target = $region68
        $region67: #{tpu_custom_call.1} parent=43 // pred_region
          %s1636 = smul.u32 32, %s27
          %s1637 = ssub.s32 125, %s1636
          %p1638 = scmp.lt.s32.totalorder %s1637, 32
          %s1639 = scalar_select %p1638, %s1637, 32
          %s1640 = smul.u32 128, %s1639
          %s1641 = smul.u32 %s1640, 2
          %s1643 = ssub.s32 8192, %s1641
          %1644 = vsyncadd %s1629, %s1643
          %p1645 = scmp.ne.s32.totalorder 0, %s1641
          %s1646 = smul.addr %s1636, 2
          %s1647 = smul.addr %s1646, 128
          %s1648 = scalar_lea.hbm %s6, %s1647
          %s1649 = smul.u32 16, %s1639
          %s1650 = sshll.u32 %s1632, 4
          %s1651 = int_to_ptr.vmem [resolvable:$true] %s1650
          %s1652 = sshll.u32 %s1649, 4
          %1656 = dma.vmem_to_hbm [thread:$0]  (%p1645), %s1651, %s1652, %s1648, %s1629, 256, 256, 16
        $region68: #{tpu_custom_call.1} parent=43 // pred_fallthru
          _
      $region44: #{tpu_custom_call.1} parent=5 // pred_fallthru
        _
      %p1657 = scmp.le.s32.totalorder 2, %s22
      // Predicated region
      $region69: #{tpu_custom_call.1} parent=5 // pred_check
        %p1658 = pneg %p1657
      $region70: #{tpu_custom_call.1} parent=5 // pred_check_branch
        %1660 = sbr.rel (%p1658) target = $region72
      $region71: #{tpu_custom_call.1} parent=5 // pred_region
        %s1661 = ssub.s32 %s22, 2
        // Predicated region
        $region73: #{tpu_custom_call.1} parent=71 // pred_check
          %p1662 = pneg %p192
        $region74: #{tpu_custom_call.1} parent=71 // pred_check_branch
          %1664 = sbr.rel (%p1662) target = $region76
        $region75: #{tpu_custom_call.1} parent=71 // pred_region
          %s1665 = sand.u32 %s177, 1
          %s1666 = scalar_lea.sflag [#allocation4], %s1665
          %s1667 = sand.u32 %s177, 1
          %s1668 = smul.addr %s1667, 512
          %s1669 = scalar_lea.vmem [#allocation11], %s1668
          %1670 = dma.done %s1666, 8192
        $region76: #{tpu_custom_call.1} parent=71 // pred_fallthru
          _
      $region72: #{tpu_custom_call.1} parent=5 // pred_fallthru
        _
    $region6: #{tpu_custom_call.1} parent=1 // loop_footer
      %s26 = sadd.s32 1, %s22
    $region7: #{tpu_custom_call.1} parent=1 // loop_footer_branch
      %21 = sbr.rel target = $region3
    $region8: #{tpu_custom_call.1} parent=1 // loop_exit
      _
    %1671 = vsyncpa [#allocation3], 1
    %s1672 = scalar_lea.sflag [#allocation3], 1
    %1673 = vsyncpa %s1672, 1
    %1674 = vsyncpa [#allocation6], 1
    %s1675 = scalar_lea.sflag [#allocation6], 1
    %1676 = vsyncpa %s1675, 1
    %1677 = vsyncpa [#allocation9], 1
    %1678 = vsyncpa [#allocation4], 1
    %s1679 = scalar_lea.sflag [#allocation4], 1
    %1680 = vsyncpa %s1679, 1

</llo_original>
